<compile_context>
chip_gen: v7x
topology: tpu7x:2x2x1
jax: 0.10.0
libtpu: 0.0.40
codegen_flags: <defaults>
</compile_context>

<pallas_src>
import functools
import math

import jax
import jax.numpy as jnp
from jax.experimental import pallas as pl
from jax.experimental.pallas import tpu as pltpu


_DTYPE = jnp.bfloat16      # compute dtype for weights / activations (MXU-native)

_TM = 256                  # rows per M tile (matmul)
_TN = 256                  # cols per N tile (matmul)
_MAX_SINGLE_K = 1024       # contraction dims up to this run as one K step
_MULTI_K_TILES = (512, 384, 256, 128)   # K tiles tried (must divide K exactly)
_TR = 512                  # rows per standalone-LayerNorm tile


def _round_up(x, m):
    return ((x + m - 1) // m) * m


def _pad_to(a, shape):
    pads = [(0, s - d) for d, s in zip(a.shape, shape)]
    if all(p == (0, 0) for p in pads):
        return a
    return jnp.pad(a, pads)


# ------------------------------ LayerNorm ---------------------------------- #

def _layernorm_kernel(x_ref, g_ref, b_ref, o_ref):
    x = x_ref[...].astype(jnp.float32)          # stats in fp32 (fp16-safe LN)
    mu = jnp.mean(x, axis=-1, keepdims=True)
    xc = x - mu
    var = jnp.mean(xc * xc, axis=-1, keepdims=True)
    y = xc * jax.lax.rsqrt(var + 1e-5)
    y = y * g_ref[...].astype(jnp.float32) + b_ref[...].astype(jnp.float32)
    o_ref[...] = y.astype(o_ref.dtype)


def layernorm(x, gamma, beta):
    """Row-tiled LayerNorm over the last dim (standalone; most LNs are fused
    into the following matmul via linear(..., ln=...))."""
    shp = x.shape
    D = shp[-1]
    x2 = x.reshape(-1, D)
    R = x2.shape[0]
    if R <= _TR:
        tr, Rp = R, R                       # full-extent block, no padding
    else:
        tr, Rp = _TR, _round_up(R, _TR)
    xp = _pad_to(x2, (Rp, D))
    out = pl.pallas_call(
        _layernorm_kernel,
        out_shape=jax.ShapeDtypeStruct((Rp, D), x.dtype),
        grid=(Rp // tr,),
        in_specs=[
            pl.BlockSpec((tr, D), lambda i: (i, 0)),
            pl.BlockSpec((1, D), lambda i: (0, 0)),
            pl.BlockSpec((1, D), lambda i: (0, 0)),
        ],
        out_specs=pl.BlockSpec((tr, D), lambda i: (i, 0)),
        compiler_params=pltpu.CompilerParams(dimension_semantics=("parallel",)),
    )(xp, gamma.reshape(1, D), beta.reshape(1, D))
    if Rp != R:
        out = out[:R]
    return out.reshape(shp)


# ------------------ tiled matmul (+fused LN prologue/epilogue) -------------- #

def _matmul_kernel(*refs, activation, has_bias, has_residual, has_ln, single_k):
    idx = 0
    x_ref = refs[idx]; idx += 1
    w_ref = refs[idx]; idx += 1
    g_ref = bl_ref = None
    if has_ln:
        g_ref = refs[idx]; idx += 1
        bl_ref = refs[idx]; idx += 1
    b_ref = None
    if has_bias:
        b_ref = refs[idx]; idx += 1
    r_ref = None
    if has_residual:
        r_ref = refs[idx]; idx += 1
    o_ref = refs[idx]; idx += 1
    acc_ref = None if single_k else refs[idx]

    x = x_ref[...]
    if has_ln:                                   # fused LayerNorm prologue
        xf = x.astype(jnp.float32)
        mu = jnp.mean(xf, axis=-1, keepdims=True)
        xc = xf - mu
        var = jnp.mean(xc * xc, axis=-1, keepdims=True)
        xn = xc * jax.lax.rsqrt(var + 1e-5)
        xn = xn * g_ref[...].astype(jnp.float32) + bl_ref[...].astype(jnp.float32)
        x = xn.astype(x_ref.dtype)               # back to bf16 for the MXU

    def epilogue(y):
        if has_bias:
            y = y + b_ref[...].astype(jnp.float32)
        if activation == "quick_gelu":
            y = y * jax.nn.sigmoid(1.702 * y)
        if has_residual:
            y = y + r_ref[...].astype(jnp.float32)
        return y.astype(o_ref.dtype)

    if single_k:                                 # no accumulator round trip
        y = jnp.dot(x, w_ref[...], preferred_element_type=jnp.float32)
        o_ref[...] = epilogue(y)
    else:
        k = pl.program_id(2)

        @pl.when(k == 0)
        def _init():
            acc_ref[...] = jnp.zeros_like(acc_ref)

        acc_ref[...] += jnp.dot(x, w_ref[...], preferred_element_type=jnp.float32)

        @pl.when(k == pl.num_programs(2) - 1)
        def _finalize():
            o_ref[...] = epilogue(acc_ref[...])


def linear(x, w, b=None, activation="none", residual=None, ln=None):
    """y = [residual +] act(LN?(x) @ w [+ b]) with an MXU-tiled kernel.

    x: (..., Din), w: (Din, Dout) bf16.  LN (gamma, beta) is fused into the
    matmul prologue when Din fits a single K tile; bias / QuickGELU / residual
    are fused into the epilogue.  Tiles are chosen to divide the real dims so
    padding / slicing glue is a no-op at CLIP sizes.
    """
    x_shape = x.shape
    K = x_shape[-1]
    N = w.shape[1]
    x2 = x.reshape(-1, K)
    if x2.dtype != w.dtype:
        x2 = x2.astype(w.dtype)
    R = x2.shape[0]

    # --- K tiling -----------------------------------------------------------
    if K <= _MAX_SINGLE_K:
        tk, Kp = K, K
    else:
        tk = next((t for t in _MULTI_K_TILES if K % t == 0), 0)
        if tk:
            Kp = K
        else:                                    # rare fallback: zero-pad K
            tk = 256
            Kp = _round_up(K, tk)
    single_k = (Kp == tk)

    if ln is not None and not single_k:          # cannot fuse LN across K tiles
        x2 = layernorm(x2, ln[0], ln[1])
        ln = None
    has_ln = ln is not None

    # --- M tiling -----------------------------------------------------------
    if R <= _TM:
        tm, Mp = R, R                            # full-extent block, no pad
    else:
        tm, Mp = _TM, _round_up(R, _TM)

    # --- N tiling -----------------------------------------------------------
    if N <= _TN:
        tn, Np = N, N
    else:
        tn = next((t for t in (256, 128) if N % t == 0), 0)
        if tn:
            Np = N
        else:
            tn = 128
            Np = _round_up(N, tn)

    args = [_pad_to(x2, (Mp, Kp)), _pad_to(w, (Kp, Np))]

    if single_k:
        x_map = lambda i, j: (i, 0)
        w_map = lambda i, j: (0, j)
        gb_map = lambda i, j: (0, 0)
        b_map = lambda i, j: (0, j)
        mn_map = lambda i, j: (i, j)
        grid = (Mp // tm, Np // tn)
        sem = ("parallel", "parallel")
        scratch = []
    else:
        x_map = lambda i, j, k: (i, k)
        w_map = lambda i, j, k: (k, j)
        gb_map = lambda i, j, k: (0, 0)
        b_map = lambda i, j, k: (0, j)
        mn_map = lambda i, j, k: (i, j)
        grid = (Mp // tm, Np // tn, Kp // tk)
        sem = ("parallel", "parallel", "arbitrary")
        scratch = [pltpu.VMEM((tm, tn), jnp.float32)]

    in_specs = [pl.BlockSpec((tm, tk), x_map), pl.BlockSpec((tk, tn), w_map)]
    if has_ln:
        args += [ln[0].reshape(1, K).astype(jnp.float32),
                 ln[1].reshape(1, K).astype(jnp.float32)]
        in_specs += [pl.BlockSpec((1, K), gb_map), pl.BlockSpec((1, K), gb_map)]
    if b is not None:
        args.append(_pad_to(b.reshape(1, N), (1, Np)))
        in_specs.append(pl.BlockSpec((1, tn), b_map))
    if residual is not None:
        args.append(_pad_to(residual.reshape(-1, N), (Mp, Np)))
        in_specs.append(pl.BlockSpec((tm, tn), mn_map))

    out = pl.pallas_call(
        functools.partial(_matmul_kernel, activation=activation,
                          has_bias=b is not None,
                          has_residual=residual is not None,
                          has_ln=has_ln, single_k=single_k),
        out_shape=jax.ShapeDtypeStruct((Mp, Np), x2.dtype),
        grid=grid,
        in_specs=in_specs,
        out_specs=pl.BlockSpec((tm, tn), mn_map),
        scratch_shapes=scratch,
        compiler_params=pltpu.CompilerParams(dimension_semantics=sem),
    )(*args)

    if Mp != R or Np != N:
        out = out[:R, :N]
    return out.reshape(x_shape[:-1] + (N,))


# --------------------------- fused attention -------------------------------- #

def _attn_heads_kernel(*refs, n_head, dh, scale, has_mask):
    """All heads of one batch element per grid step (fused (L, 3D) QKV block)."""
    qkv_ref = refs[0]
    m_ref = refs[1] if has_mask else None
    o_ref = refs[-1]
    D = n_head * dh
    mask = m_ref[...] if has_mask else None

    outs = []
    for h in range(n_head):
        q = qkv_ref[0, :, h * dh:(h + 1) * dh] * scale          # scale on q
        kk = qkv_ref[0, :, D + h * dh:D + (h + 1) * dh]
        v = qkv_ref[0, :, 2 * D + h * dh:2 * D + (h + 1) * dh]
        s = jax.lax.dot_general(q, kk, (((1,), (1,)), ((), ())),
                                preferred_element_type=jnp.float32)
        if has_mask:
            s = s + mask
        s = s - jnp.max(s, axis=-1, keepdims=True)
        p = jnp.exp(s)
        p = p * pl.reciprocal(jnp.sum(p, axis=-1, keepdims=True), approx=True)
        outs.append(jnp.dot(p.astype(v.dtype), v, preferred_element_type=jnp.float32))
    o = outs[0] if len(outs) == 1 else jnp.concatenate(outs, axis=-1)
    o_ref[0] = o.astype(o_ref.dtype)             # single lane-dense store


def _attn_group_kernel(*refs, hg, dh, scale, has_mask):
    """One 128-lane head group of one batch element per grid step."""
    q_ref, k_ref, v_ref = refs[0], refs[1], refs[2]
    m_ref = refs[3] if has_mask else None
    o_ref = refs[-1]
    mask = m_ref[...] if has_mask else None

    outs = []
    for h in range(hg):
        sl = slice(h * dh, (h + 1) * dh)
        q = q_ref[0, :, sl] * scale
        kk = k_ref[0, :, sl]
        v = v_ref[0, :, sl]
        s = jax.lax.dot_general(q, kk, (((1,), (1,)), ((), ())),
                                preferred_element_type=jnp.float32)
        if has_mask:
            s = s + mask
        s = s - jnp.max(s, axis=-1, keepdims=True)
        p = jnp.exp(s)
        p = p * pl.reciprocal(jnp.sum(p, axis=-1, keepdims=True), approx=True)
        outs.append(jnp.dot(p.astype(v.dtype), v, preferred_element_type=jnp.float32))
    o = outs[0] if len(outs) == 1 else jnp.concatenate(outs, axis=-1)
    o_ref[0] = o.astype(o_ref.dtype)             # single lane-dense (128) store


def fused_attention(qkv, n_head, attn_mask=None):
    """softmax(q k^T / sqrt(dh) [+ mask]) v for each batch element.

    qkv: (B, L, 3*D) fused projection (batch-first).  Returns (B, L, D).
    """
    B, L, threeD = qkv.shape
    D = threeD // 3
    dh = D // n_head
    has_mask = attn_mask is not None
    scale = 1.0 / math.sqrt(dh)
    mask_args = [attn_mask.astype(jnp.float32)] if has_mask else []

    # Head grouping so q/k/v sub-blocks and the output store are lane-dense.
    if dh % 128 == 0:
        hg = 1
    elif (128 % dh == 0) and (n_head % (128 // dh) == 0) and (n_head > 128 // dh):
        hg = 128 // dh
    else:
        hg = n_head
    ng = n_head // hg
    hd = hg * dh

    if ng == 1:
        # All heads per step; full fused QKV block (keeps blocks full-extent).
        in_specs = [pl.BlockSpec((1, L, threeD), lambda b: (b, 0, 0))]
        if has_mask:
            in_specs.append(pl.BlockSpec((L, L), lambda b: (0, 0)))
        return pl.pallas_call(
            functools.partial(_attn_heads_kernel, n_head=n_head, dh=dh,
                              scale=scale, has_mask=has_mask),
            out_shape=jax.ShapeDtypeStruct((B, L, D), qkv.dtype),
            grid=(B,),
            in_specs=in_specs,
            out_specs=pl.BlockSpec((1, L, D), lambda b: (b, 0, 0)),
            compiler_params=pltpu.CompilerParams(dimension_semantics=("parallel",)),
        )(qkv, *mask_args)

    # Grouped path: grid (B, head groups); q/k/v are 128-lane slices of the
    # same fused QKV array selected purely via index maps (no host-side split).
    in_specs = [
        pl.BlockSpec((1, L, hd), lambda b, g: (b, 0, g)),
        pl.BlockSpec((1, L, hd), lambda b, g: (b, 0, g + ng)),
        pl.BlockSpec((1, L, hd), lambda b, g: (b, 0, g + 2 * ng)),
    ]
    if has_mask:
        in_specs.append(pl.BlockSpec((L, L), lambda b, g: (0, 0)))
    return pl.pallas_call(
        functools.partial(_attn_group_kernel, hg=hg, dh=dh, scale=scale,
                          has_mask=has_mask),
        out_shape=jax.ShapeDtypeStruct((B, L, D), qkv.dtype),
        grid=(B, ng),
        in_specs=in_specs,
        out_specs=pl.BlockSpec((1, L, hd), lambda b, g: (b, 0, g)),
        compiler_params=pltpu.CompilerParams(
            dimension_semantics=("parallel", "parallel")),
    )(qkv, qkv, qkv, *mask_args)


# ------------------------- fused normalize + logits ------------------------- #

def _clip_logits_kernel(img_ref, txt_ref, s_ref, o_ref):
    img = img_ref[...].astype(jnp.float32)
    txt = txt_ref[...].astype(jnp.float32)
    img = img * jax.lax.rsqrt(
        jnp.maximum(jnp.sum(img * img, axis=-1, keepdims=True), 1e-24))
    txt = txt * jax.lax.rsqrt(
        jnp.maximum(jnp.sum(txt * txt, axis=-1, keepdims=True), 1e-24))
    logits = jax.lax.dot_general(img, txt, (((1,), (1,)), ((), ())),
                                 preferred_element_type=jnp.float32)
    o_ref[...] = (s_ref[0] * logits).astype(o_ref.dtype)


def clip_logits(image_features, text_features, logit_scale):
    """logits = exp(logit_scale) * normalize(img) @ normalize(txt).T (fused)."""
    B, E = image_features.shape
    C = text_features.shape[0]
    scale = jnp.exp(logit_scale).reshape(1).astype(jnp.float32)
    if C > 128 and C % 128 == 0:
        tc = 256 if C % 256 == 0 else 128        # class-tiled parallel grid
    else:
        tc = C
    return pl.pallas_call(
        _clip_logits_kernel,
        out_shape=jax.ShapeDtypeStruct((B, C), jnp.float32),
        grid=(C // tc,),
        in_specs=[
            pl.BlockSpec((B, E), lambda i: (0, 0)),
            pl.BlockSpec((tc, E), lambda i: (i, 0)),
            pl.BlockSpec(memory_space=pltpu.MemorySpace.SMEM),   # scalar in SMEM
        ],
        out_specs=pl.BlockSpec((B, tc), lambda i: (0, i)),
        compiler_params=pltpu.CompilerParams(dimension_semantics=("parallel",)),
    )(image_features, text_features, scale)


# -------------------------- transformer building blocks --------------------- #

def residual_block(x, p, n_head, attn_mask=None):
    """x = x + attn(ln_1(x)); x = x + mlp(ln_2(x)) with QuickGELU MLP.

    ln_1 / ln_2 are fused into the QKV / fc matmul prologues; bias, GELU and
    the residual adds are fused into the matmul epilogues.
    """
    qkv = linear(x, p["attn"]["w_qkv"], p["attn"]["b_qkv"],
                 ln=(p["ln1_g"], p["ln1_b"]))                    # LN1 fused
    a = fused_attention(qkv, n_head, attn_mask)
    x = linear(a, p["attn"]["w_out"], p["attn"]["b_out"], residual=x)

    h = linear(x, p["fc_w"], p["fc_b"], activation="quick_gelu",
               ln=(p["ln2_g"], p["ln2_b"]))                      # LN2 fused
    x = linear(h, p["proj_w"], p["proj_b"], residual=x)
    return x


def transformer(x, layers, n_head, attn_mask, deep_prompts, n_ctx, mode):
    """Residual-attention stack with MaPLe-style deep-prompt injection.

    x: (B, L, D) batch-first.  deep_prompts: (P, n_ctx, D) or None.
    mode == "text":   replace tokens [1 : 1+n_ctx] at layers >= 1.
    mode == "visual": replace the trailing n_ctx prompt tokens at layers >= 1.
    """
    n_deep = 0 if deep_prompts is None else deep_prompts.shape[0]
    for i, lp in enumerate(layers):
        if i > 0 and (i - 1) < n_deep:
            dp = deep_prompts[i - 1].astype(x.dtype)               # (n_ctx, D)
            dp = jnp.broadcast_to(dp[None], (x.shape[0], n_ctx, x.shape[2]))
            if mode == "text":
                x = jnp.concatenate([x[:, :1], dp, x[:, 1 + n_ctx:]], axis=1)
            else:
                x = jnp.concatenate([x[:, :-n_ctx], dp], axis=1)
        x = residual_block(x, lp, n_head, attn_mask)
    return x


# ------------------------------- model pieces ------------------------------- #

def prompt_learner_forward(p, cfg):
    n_cls, n_ctx, D = cfg["n_cls"], cfg["n_ctx"], cfg["ctx_dim"]
    ctx = p["ctx"]                                                 # (n_ctx, D)
    ctx_e = jnp.broadcast_to(ctx[None], (n_cls, n_ctx, D))
    prompts = jnp.concatenate([p["token_prefix"], ctx_e, p["token_suffix"]], axis=1)

    # LightTransformer over the prompt stack: seq = n_ctx, batch = depth.
    vp = jnp.concatenate([ctx[None], p["deep_prompts"]], axis=0)   # (depth, n_ctx, D)
    vp = layernorm(vp, p["ln_pre_g"], p["ln_pre_b"])
    vp = residual_block(vp, p["light"], cfg["light_heads"], None)  # batch-first
    vp = layernorm(vp, p["ln_post_g"], p["ln_post_b"])
    vp = linear(vp, p["vproj_w"], p["vproj_b"])                    # (depth, n_ctx, Vwidth)
    return prompts, p["deep_prompts"], vp


def text_encoder_forward(p, prompts, tokenized_prompts, deep_prompts, cfg):
    x = prompts + p["pos_emb"][None]                               # (n_cls, n_tkn, D)
    x = transformer(x, p["layers"], cfg["text_heads"], p["attn_mask"],
                    deep_prompts, cfg["n_ctx"], mode="text")
    x = layernorm(x, p["ln_final_g"], p["ln_final_b"])
    eot = jnp.argmax(tokenized_prompts, axis=-1)
    x = x[jnp.arange(x.shape[0]), eot]                             # (n_cls, D)
    return linear(x, p["text_projection"])                         # (n_cls, E)


def image_encoder_forward(p, image, shared_ctx, deep_prompts, cfg):
    # image: NCHW.  Conv2d(patch, stride=patch, no bias) == unfold + matmul.
    image = image.astype(_DTYPE)                                   # image.type(dtype)
    B, C, H, W = image.shape
    patch, V = cfg["patch"], cfg["vision_width"]
    gh, gw = H // patch, W // patch
    x = image.reshape(B, C, gh, patch, gw, patch)
    x = jnp.transpose(x, (0, 2, 4, 1, 3, 5)).reshape(B, gh * gw, C * patch * patch)
    x = linear(x, p["patch_w"])                                    # (B, n_patches, V)
    cls = jnp.broadcast_to(p["class_emb"].reshape(1, 1, V), (B, 1, V))
    x = jnp.concatenate([cls, x], axis=1)                          # (B, 1+n_patches, V)
    x = x + p["pos_emb"][None]
    x = layernorm(x, p["ln_pre_g"], p["ln_pre_b"])
    vis_ctx = jnp.broadcast_to(shared_ctx, (B,) + shared_ctx.shape[1:])
    x = jnp.concatenate([x, vis_ctx.astype(x.dtype)], axis=1)      # append prompt tokens
    x = transformer(x, p["layers"], cfg["vision_heads"], None,
                    deep_prompts, cfg["n_ctx"], mode="visual")
    x = layernorm(x[:, 0, :], p["ln_post_g"], p["ln_post_b"])
    return linear(x, p["proj"])                                    # (B, E)


def custom_clip_forward(params, cfg, image):
    prompts, text_deep, visual_deep = prompt_learner_forward(params["prompt_learner"], cfg)
    image_features = image_encoder_forward(params["visual"], image,
                                           visual_deep[:1], visual_deep[1:], cfg)
    text_features = text_encoder_forward(params["text"], prompts,
                                         params["tokenized_prompts"],
                                         text_deep, cfg)
    return clip_logits(image_features, text_features, params["logit_scale"])


# ----------------------------- parameter init ------------------------------- #

def _normal(key, shape, std=0.02, dtype=_DTYPE):
    return (std * jax.random.normal(key, shape)).astype(dtype)


def init_block(key, D):
    ks = jax.random.split(key, 4)
    return {
        "ln1_g": jnp.ones((D,), jnp.float32), "ln1_b": jnp.zeros((D,), jnp.float32),
        "attn": {
            "w_qkv": _normal(ks[0], (D, 3 * D)), "b_qkv": jnp.zeros((3 * D,), jnp.float32),
            "w_out": _normal(ks[1], (D, D)), "b_out": jnp.zeros((D,), jnp.float32),
        },
        "ln2_g": jnp.ones((D,), jnp.float32), "ln2_b": jnp.zeros((D,), jnp.float32),
        "fc_w": _normal(ks[2], (D, 4 * D)), "fc_b": jnp.zeros((4 * D,), jnp.float32),
        "proj_w": _normal(ks[3], (4 * D, D)), "proj_b": jnp.zeros((D,), jnp.float32),
    }


def init_params(key, cfg):
    D, V, E = cfg["ctx_dim"], cfg["vision_width"], cfg["embed_dim"]
    n_cls, n_ctx, n_tkn = cfg["n_cls"], cfg["n_ctx"], cfg["n_tkn"]
    keys = iter(jax.random.split(key, 64))
    nk = lambda: next(keys)

    prompt_learner = {
        "ctx": _normal(nk(), (n_ctx, D)),
        "deep_prompts": _normal(nk(), (cfg["deep_depth"] - 1, n_ctx, D)),
        "ln_pre_g": jnp.ones((D,), jnp.float32), "ln_pre_b": jnp.zeros((D,), jnp.float32),
        "light": init_block(nk(), D),
        "ln_post_g": jnp.ones((D,), jnp.float32), "ln_post_b": jnp.zeros((D,), jnp.float32),
        "vproj_w": _normal(nk(), (D, V)), "vproj_b": jnp.zeros((V,), jnp.float32),
        "token_prefix": _normal(nk(), (n_cls, 1, D)),
        "token_suffix": _normal(nk(), (n_cls, n_tkn - 1 - n_ctx, D)),
    }

    text = {
        "pos_emb": _normal(nk(), (n_tkn, D)),
        "layers": [init_block(nk(), D) for _ in range(cfg["text_layers"])],
        "ln_final_g": jnp.ones((D,), jnp.float32), "ln_final_b": jnp.zeros((D,), jnp.float32),
        "text_projection": _normal(nk(), (D, E)),
        # Causal mask kept in fp32 (the -1e30 constant is not bf16-safe).
        "attn_mask": jnp.triu(jnp.full((n_tkn, n_tkn), -1e30, jnp.float32), k=1),
    }

    n_patches = (cfg["image_size"] // cfg["patch"]) ** 2
    visual = {
        "patch_w": _normal(nk(), (3 * cfg["patch"] * cfg["patch"], V)),
        "class_emb": _normal(nk(), (V,)),
        "pos_emb": _normal(nk(), (1 + n_patches, V)),
        "ln_pre_g": jnp.ones((V,), jnp.float32), "ln_pre_b": jnp.zeros((V,), jnp.float32),
        "layers": [init_block(nk(), V) for _ in range(cfg["vision_layers"])],
        "ln_post_g": jnp.ones((V,), jnp.float32), "ln_post_b": jnp.zeros((V,), jnp.float32),
        "proj": _normal(nk(), (V, E)),
    }

    # Synthetic tokenized prompts: SOT, small ids, EOT (max id) at varying positions.
    tok = jax.random.randint(nk(), (n_cls, n_tkn), 1, 1000)
    tok = tok.at[:, 0].set(49406)
    eot_pos = jnp.array([(2 + n_ctx + i) % n_tkn for i in range(n_cls)])
    tok = tok.at[jnp.arange(n_cls), eot_pos].set(49407)

    return {
        "prompt_learner": prompt_learner,
        "text": text,
        "visual": visual,
        "tokenized_prompts": tok.astype(jnp.int32),
        "logit_scale": jnp.array(math.log(1.0 / 0.07), jnp.float32),
    }


# ----------------------------------- main ----------------------------------- #

if __name__ == "__main__":
    cfg = dict(
        n_cls=4, n_ctx=4, n_tkn=16,
        ctx_dim=64, embed_dim=64,
        text_heads=2, text_layers=2,
        image_size=32, patch=8, vision_width=64, vision_heads=2, vision_layers=2,
        deep_depth=3, light_heads=1,   # LightTransformer: n_head = ctx_dim // 64
    )
    key = jax.random.PRNGKey(0)
    kp, ki = jax.random.split(key)
    params = init_params(kp, cfg)
    image = jax.random.normal(ki, (2, 3, cfg["image_size"], cfg["image_size"]),
                              dtype=jnp.float32)

    # Smoke-test kernel paths the tiny model config does not exercise:
    # (a) multi-K-step matmul with fp32 accumulator + fused bias/GELU/residual.
    xk = jax.random.normal(jax.random.PRNGKey(1), (64, 1536)).astype(_DTYPE)
    wk = (0.02 * jax.random.normal(jax.random.PRNGKey(2), (1536, 256))).astype(_DTYPE)
    bk = jnp.zeros((256,), jnp.float32)
    rk = jnp.ones((64, 256), _DTYPE)
    yk = jax.jit(lambda a, r: linear(a, wk, bk, activation="quick_gelu",
                                     residual=r))(xk, rk)
    jax.block_until_ready(yk)
    assert yk.shape == (64, 256)
    assert bool(jnp.all(jnp.isfinite(yk.astype(jnp.float32))))

    # (b) grouped attention path (dh=64, 4 heads -> two 128-lane head groups).
    qkv_t = jax.random.normal(jax.random.PRNGKey(3), (2, 16, 3 * 256)).astype(_DTYPE)
    mask_t = jnp.triu(jnp.full((16, 16), -1e30, jnp.float32), k=1)
    at = jax.jit(lambda q: fused_attention(q, 4, mask_t))(qkv_t)
    jax.block_until_ready(at)
    assert at.shape == (2, 16, 256)
    assert bool(jnp.all(jnp.isfinite(at.astype(jnp.float32))))

    # Full CustomCLIP forward.
    fwd = jax.jit(lambda img: custom_clip_forward(params, cfg, img))
    logits = fwd(image)
    jax.block_until_ready(logits)
    assert logits.shape == (image.shape[0], cfg["n_cls"])
    assert bool(jnp.all(jnp.isfinite(logits)))
    print("KERNEL_OK")
</pallas_src>

<mosaic_0001>
module attributes {stable_mosaic.version = 11 : i64} {
  func.func @_matmul_kernel(%arg0: i32, %arg1: i32, %arg2: i32, %arg3: memref<64x512xbf16, #tpu.memory_space<vmem>>, %arg4: memref<512x256xbf16, #tpu.memory_space<vmem>>, %arg5: memref<1x256xf32, #tpu.memory_space<vmem>>, %arg6: memref<64x256xbf16, #tpu.memory_space<vmem>>, %arg7: memref<64x256xbf16, #tpu.memory_space<vmem>>, %arg8: memref<64x256xf32, #tpu.memory_space<vmem>>) attributes {dimension_semantics = [#tpu.dimension_semantics<parallel>, #tpu.dimension_semantics<parallel>, #tpu.dimension_semantics<arbitrary>], iteration_bounds = array<i64: 1, 1, 3>, scalar_prefetch = 0 : i64, scratch_operands = 1 : i64, tpu.core_type = #tpu.core_type<tc>, window_params = [{transform_indices = @transform_0, window_bounds = array<i64: 64, 512>}, {transform_indices = @transform_1, window_bounds = array<i64: 512, 256>}, {transform_indices = @transform_2, window_bounds = array<i64: 1, 256>}, {transform_indices = @transform_3, window_bounds = array<i64: 64, 256>}, {transform_indices = @transform_4, window_bounds = array<i64: 64, 256>}]} {
    %c0 = arith.constant 0 : index
    %c0_0 = arith.constant 0 : index
    %0 = vector.load %arg3[%c0, %c0_0] : memref<64x512xbf16, #tpu.memory_space<vmem>>, vector<64x512xbf16>
    %c0_i32 = arith.constant 0 : i32
    %1 = arith.cmpi eq, %arg2, %c0_i32 : i32
    %2 = arith.extui %1 : i1 to i32
    %c0_i32_1 = arith.constant 0 : i32
    %3 = arith.cmpi ne, %2, %c0_i32_1 : i32
    scf.if %3 {
      %cst_9 = arith.constant 0.000000e+00 : f32
      %12 = vector.broadcast %cst_9 : f32 to vector<64x256xf32>
      %c0_10 = arith.constant 0 : index
      %c0_11 = arith.constant 0 : index
      %13 = vector.load %arg8[%c0_10, %c0_11] : memref<64x256xf32, #tpu.memory_space<vmem>>, vector<64x256xf32>
      tpu.vector_store %arg8[%c0_10, %c0_11], %12 {strides = array<i32>} : memref<64x256xf32, #tpu.memory_space<vmem>>, vector<64x256xf32>,
    } else {
    }
    %c0_2 = arith.constant 0 : index
    %c0_3 = arith.constant 0 : index
    %4 = vector.load %arg8[%c0_2, %c0_3] : memref<64x256xf32, #tpu.memory_space<vmem>>, vector<64x256xf32>
    %c0_4 = arith.constant 0 : index
    %c0_5 = arith.constant 0 : index
    %5 = vector.load %arg4[%c0_4, %c0_5] : memref<512x256xbf16, #tpu.memory_space<vmem>>, vector<512x256xbf16>
    %cst = arith.constant dense<0.000000e+00> : vector<64x256xf32>
    %6 = tpu.matmul %0, %5, %cst {dimension_numbers = #tpu.dot_dimension_numbers<[1], [0], [0], [1], [0, 0, 1, 1], [], []>} : vector<64x512xbf16>, vector<512x256xbf16>, vector<64x256xf32> -> vector<64x256xf32>
    %7 = arith.addf %4, %6 : vector<64x256xf32>
    %c0_6 = arith.constant 0 : index
    %c0_7 = arith.constant 0 : index
    %8 = vector.load %arg8[%c0_6, %c0_7] : memref<64x256xf32, #tpu.memory_space<vmem>>, vector<64x256xf32>
    tpu.vector_store %arg8[%c0_6, %c0_7], %7 {strides = array<i32>} : memref<64x256xf32, #tpu.memory_space<vmem>>, vector<64x256xf32>,
    %c2_i32 = arith.constant 2 : i32
    %9 = arith.cmpi eq, %arg2, %c2_i32 : i32
    %10 = arith.extui %9 : i1 to i32
    %c0_i32_8 = arith.constant 0 : i32
    %11 = arith.cmpi ne, %10, %c0_i32_8 : i32
    scf.if %11 {
      %c0_9 = arith.constant 0 : index
      %c0_10 = arith.constant 0 : index
      %12 = vector.load %arg8[%c0_9, %c0_10] : memref<64x256xf32, #tpu.memory_space<vmem>>, vector<64x256xf32>
      %c0_11 = arith.constant 0 : index
      %c0_12 = arith.constant 0 : index
      %13 = vector.load %arg5[%c0_11, %c0_12] : memref<1x256xf32, #tpu.memory_space<vmem>>, vector<1x256xf32>
      %14 = vector.broadcast %13 : vector<1x256xf32> to vector<64x256xf32>
      %15 = arith.addf %12, %14 : vector<64x256xf32>
      %cst_13 = arith.constant 1.702000e+00 : f32
      %16 = vector.broadcast %cst_13 : f32 to vector<64x256xf32>
      %17 = arith.mulf %16, %15 : vector<64x256xf32>
      %18 = arith.negf %17 : vector<64x256xf32>
      %19 = math.exp %18 : vector<64x256xf32>
      %cst_14 = arith.constant 1.000000e+00 : f32
      %20 = vector.broadcast %cst_14 : f32 to vector<64x256xf32>
      %21 = arith.addf %20, %19 : vector<64x256xf32>
      %22 = arith.divf %20, %21 : vector<64x256xf32>
      %23 = arith.mulf %15, %22 : vector<64x256xf32>
      %c0_15 = arith.constant 0 : index
      %c0_16 = arith.constant 0 : index
      %24 = vector.load %arg6[%c0_15, %c0_16] : memref<64x256xbf16, #tpu.memory_space<vmem>>, vector<64x256xbf16>
      %25 = arith.extf %24 : vector<64x256xbf16> to vector<64x256xf32>
      %26 = arith.addf %23, %25 : vector<64x256xf32>
      %27 = arith.truncf %26 : vector<64x256xf32> to vector<64x256xbf16>
      %c0_17 = arith.constant 0 : index
      %c0_18 = arith.constant 0 : index
      %28 = vector.load %arg7[%c0_17, %c0_18] : memref<64x256xbf16, #tpu.memory_space<vmem>>, vector<64x256xbf16>
      tpu.vector_store %arg7[%c0_17, %c0_18], %27 {strides = array<i32>} : memref<64x256xbf16, #tpu.memory_space<vmem>>, vector<64x256xbf16>,
    } else {
    }
    return
  }
  func.func @transform_0(%arg0: i32, %arg1: i32, %arg2: i32) -> (i32, i32) {
    %c0_i32 = arith.constant 0 : i32
    return %arg0, %arg2 : i32, i32
  }
  func.func @transform_1(%arg0: i32, %arg1: i32, %arg2: i32) -> (i32, i32) {
    %c0_i32 = arith.constant 0 : i32
    return %arg2, %arg1 : i32, i32
  }
  func.func @transform_2(%arg0: i32, %arg1: i32, %arg2: i32) -> (i32, i32) {
    %c0_i32 = arith.constant 0 : i32
    %c0_i32_0 = arith.constant 0 : i32
    return %c0_i32, %arg1 : i32, i32
  }
  func.func @transform_3(%arg0: i32, %arg1: i32, %arg2: i32) -> (i32, i32) {
    %c0_i32 = arith.constant 0 : i32
    return %arg0, %arg1 : i32, i32
  }
  func.func @transform_4(%arg0: i32, %arg1: i32, %arg2: i32) -> (i32, i32) {
    %c0_i32 = arith.constant 0 : i32
    return %arg0, %arg1 : i32, i32
  }
}

</mosaic_0001>

<llo_original>
// kernel: _lambda_.1
$region0: #{_lambda_.1}
  #allocation0 [shape = 'u32[]', space=smem, size = 0x4, offset = 0x4, fixed_abs, tag = 'smem constant byte address 0x4 - core index']
  #allocation1 [shape = 'u32[144,128]{1,0:T(1,128)}', space=vmem, size = 0x12000, scoped, tag = 'internal scratch']
  #allocation2 [shape = 'f32[64,256]{1,0:T(8,128)}', space=vmem, size = 0x10000, scoped, tag = 'scratch operand']
  %s0 = inlined_call_operand.vmem [shape: bf16[64,1536], index: 0, kind: input, shape index: {}]
  %s1 = inlined_call_operand.vmem [shape: bf16[1536,256], index: 1, kind: input, shape index: {}]
  %s2 = inlined_call_operand.vmem [shape: f32[1,256], index: 2, kind: input, shape index: {}]
  %s3 = inlined_call_operand.vmem [shape: bf16[64,256], index: 3, kind: input, shape index: {}]
  %s4 = inlined_call_operand.hbm [shape: bf16[64,256], index: 4, kind: output, shape index: {}]
  %s5 = sld [smem:[#allocation0]]
  $region80: #{_lambda_.1} parent=0
    _
  %s7 = ssub.s32 1, %s5
  %s8 = scalar_select 0, %s7, %s5
  $region1: #{_lambda_.1} parent=0
    #allocation3 [shape = 'u8[131072]{0}', space=vmem, size = 0x20000, scoped, tag = 'input window, operand 0']
    #allocation4 [shape = 'u8[32768]{0}', space=vmem, size = 0x8000, scoped, tag = 'output window, operand 0, single buffered']
    #allocation5 [shape = 's32[2]{0}', space=sflag, size = 0x8, scoped, tag = 'scoped memory for _lambda_.1']
    %9 = vsyncpa [#allocation5], 0
    loop: start=0, step=1, limit=5
    $region2: #{_lambda_.1} parent=1 // loop_pre_header
      _
    $region3: #{_lambda_.1} parent=1 // loop_header
      %s11 = sphi 0, %s15
      %p12 = scmp.ge.s32.totalorder %s11, 5
      %s18 = sphi 0, %s37
      %s19 = sphi 0, %s33
      %s20 = sphi 0, %s29
      %s21 = sphi 0, %s18
      %s22 = sphi 0, %s19
      %s23 = sphi 0, %s20
      %s24 = sphi 0, %s21
      %s25 = sphi 0, %s22
      %s26 = sphi 0, %s23
      %s42 = sphi 0, %s44
      %s45 = sphi 0, %s42
      %s46 = sphi 0, %s45
      %s62 = sphi 0, %s46
      %s70 = sphi 0, %s72
      %s73 = sphi 0, %s70
      %s74 = sphi 0, %s73
      %s90 = sphi 0, %s74
      %s96 = sphi 0, %s98
      %s99 = sphi 0, %s96
      %s100 = sphi 0, %s99
      %s116 = sphi 0, %s100
      %s124 = sphi 0, %s126
      %s127 = sphi 0, %s124
      %s128 = sphi 0, %s127
      %s144 = sphi 0, %s128
      %s152 = sphi 0, %s154
      %s155 = sphi 0, %s152
      %s156 = sphi 0, %s155
      %s172 = sphi 0, %s156
    $region4: #{_lambda_.1} parent=1 // loop_header_branch
      %14 = sbr.rel (%p12) target = $region8
    $region5: #{_lambda_.1} parent=1 // loop_body
      %s16 = ssub.s32 %s11, 1
      %s17 = ssub.s32 %s11, 2
      %s27 = sadd.s32 1, %s20
      %p28 = scmp.ge.s32.totalorder %s27, 3
      %s29 = scalar_select %p28, 0, %s27
      %s30 = sadd.s32 1, %s19
      %s31 = scalar_select %p28, %s30, %s19
      %p32 = scmp.ge.s32.totalorder %s31, 1
      %s33 = scalar_select %p32, 0, %s31
      %s34 = sadd.s32 1, %s18
      %s35 = scalar_select %p32, %s34, %s18
      %p36 = scmp.ge.s32.totalorder %s35, 1
      %s37 = scalar_select %p36, 0, %s35
      %s38 = ssub.s32 %s18, %s37
      %s39 = ssub.s32 %s20, %s29
      %s40 = sor.u32 %s38, %s39
      %p41 = scmp.eq.s32.totalorder %s40, 0
      %s43 = sadd.s32 %s42, 1
      %s44 = scalar_select %p41, %s42, %s43
      %p47 = pneg %p41
      %p48 = scmp.eq.s32.totalorder %s11, 2
      %p49 = por %p47, %p48
      %p50 = scmp.ne.s32.totalorder %s42, %s45
      %p51 = scmp.eq.s32.totalorder %s11, 0
      %p52 = por %p50, %p51
      %p53 = scmp.ne.s32.totalorder %s42, %s45
      %p54 = scmp.eq.s32.totalorder %s16, 2
      %p55 = por %p53, %p54
      %p56 = scmp.ne.s32.totalorder %s45, %s46
      %p57 = scmp.eq.s32.totalorder %s16, 0
      %p58 = por %p56, %p57
      %p59 = scmp.ne.s32.totalorder %s45, %s46
      %p60 = scmp.eq.s32.totalorder %s17, 2
      %p61 = por %p59, %p60
      %p63 = scmp.ne.s32.totalorder %s46, %s62
      %p64 = scmp.eq.s32.totalorder %s17, 0
      %p65 = por %p63, %p64
      %s66 = ssub.s32 %s20, %s29
      %s67 = ssub.s32 %s19, %s33
      %s68 = sor.u32 %s66, %s67
      %p69 = scmp.eq.s32.totalorder %s68, 0
      %s71 = sadd.s32 %s70, 1
      %s72 = scalar_select %p69, %s70, %s71
      %p75 = pneg %p69
      %p76 = scmp.eq.s32.totalorder %s11, 2
      %p77 = por %p75, %p76
      %p78 = scmp.ne.s32.totalorder %s70, %s73
      %p79 = scmp.eq.s32.totalorder %s11, 0
      %p80 = por %p78, %p79
      %p81 = scmp.ne.s32.totalorder %s70, %s73
      %p82 = scmp.eq.s32.totalorder %s16, 2
      %p83 = por %p81, %p82
      %p84 = scmp.ne.s32.totalorder %s73, %s74
      %p85 = scmp.eq.s32.totalorder %s16, 0
      %p86 = por %p84, %p85
      %p87 = scmp.ne.s32.totalorder %s73, %s74
      %p88 = scmp.eq.s32.totalorder %s17, 2
      %p89 = por %p87, %p88
      %p91 = scmp.ne.s32.totalorder %s74, %s90
      %p92 = scmp.eq.s32.totalorder %s17, 0
      %p93 = por %p91, %p92
      %s94 = ssub.s32 %s19, %s33
      %p95 = scmp.eq.s32.totalorder %s94, 0
      %s97 = sadd.s32 %s96, 1
      %s98 = scalar_select %p95, %s96, %s97
      %p101 = pneg %p95
      %p102 = scmp.eq.s32.totalorder %s11, 2
      %p103 = por %p101, %p102
      %p104 = scmp.ne.s32.totalorder %s96, %s99
      %p105 = scmp.eq.s32.totalorder %s11, 0
      %p106 = por %p104, %p105
      %p107 = scmp.ne.s32.totalorder %s96, %s99
      %p108 = scmp.eq.s32.totalorder %s16, 2
      %p109 = por %p107, %p108
      %p110 = scmp.ne.s32.totalorder %s99, %s100
      %p111 = scmp.eq.s32.totalorder %s16, 0
      %p112 = por %p110, %p111
      %p113 = scmp.ne.s32.totalorder %s99, %s100
      %p114 = scmp.eq.s32.totalorder %s17, 2
      %p115 = por %p113, %p114
      %p117 = scmp.ne.s32.totalorder %s100, %s116
      %p118 = scmp.eq.s32.totalorder %s17, 0
      %p119 = por %p117, %p118
      %s120 = ssub.s32 %s18, %s37
      %s121 = ssub.s32 %s19, %s33
      %s122 = sor.u32 %s120, %s121
      %p123 = scmp.eq.s32.totalorder %s122, 0
      %s125 = sadd.s32 %s124, 1
      %s126 = scalar_select %p123, %s124, %s125
      %p129 = pneg %p123
      %p130 = scmp.eq.s32.totalorder %s11, 2
      %p131 = por %p129, %p130
      %p132 = scmp.ne.s32.totalorder %s124, %s127
      %p133 = scmp.eq.s32.totalorder %s11, 0
      %p134 = por %p132, %p133
      %p135 = scmp.ne.s32.totalorder %s124, %s127
      %p136 = scmp.eq.s32.totalorder %s16, 2
      %p137 = por %p135, %p136
      %p138 = scmp.ne.s32.totalorder %s127, %s128
      %p139 = scmp.eq.s32.totalorder %s16, 0
      %p140 = por %p138, %p139
      %p141 = scmp.ne.s32.totalorder %s127, %s128
      %p142 = scmp.eq.s32.totalorder %s17, 2
      %p143 = por %p141, %p142
      %p145 = scmp.ne.s32.totalorder %s128, %s144
      %p146 = scmp.eq.s32.totalorder %s17, 0
      %p147 = por %p145, %p146
      %s148 = ssub.s32 %s18, %s37
      %s149 = ssub.s32 %s19, %s33
      %s150 = sor.u32 %s148, %s149
      %p151 = scmp.eq.s32.totalorder %s150, 0
      %s153 = sadd.s32 %s152, 1
      %s154 = scalar_select %p151, %s152, %s153
      %p157 = pneg %p151
      %p158 = scmp.eq.s32.totalorder %s11, 2
      %p159 = por %p157, %p158
      %p160 = scmp.ne.s32.totalorder %s152, %s155
      %p161 = scmp.eq.s32.totalorder %s11, 0
      %p162 = por %p160, %p161
      %p163 = scmp.ne.s32.totalorder %s152, %s155
      %p164 = scmp.eq.s32.totalorder %s16, 2
      %p165 = por %p163, %p164
      %p166 = scmp.ne.s32.totalorder %s155, %s156
      %p167 = scmp.eq.s32.totalorder %s16, 0
      %p168 = por %p166, %p167
      %p169 = scmp.ne.s32.totalorder %s155, %s156
      %p170 = scmp.eq.s32.totalorder %s17, 2
      %p171 = por %p169, %p170
      %p173 = scmp.ne.s32.totalorder %s156, %s172
      %p174 = scmp.eq.s32.totalorder %s17, 0
      %p175 = por %p173, %p174
      %p176 = scmp.le.s32.totalorder 1, %s11
      %p177 = scmp.lt.s32.totalorder %s11, 4
      %p178 = pnand %p176, %p177
      %p179 = pneg %p178
      // Predicated region
      $region9: #{_lambda_.1} parent=5 // pred_check
        _
      $region10: #{_lambda_.1} parent=5 // pred_check_branch
        %181 = sbr.rel (%p178) target = $region12
      $region11: #{_lambda_.1} parent=5 // pred_region
        %s182 = ssub.s32 %s11, 1
        // Predicated region
        $region13: #{_lambda_.1} parent=11 // pred_check
          %p183 = pneg %p112
        $region14: #{_lambda_.1} parent=11 // pred_check_branch
          %185 = sbr.rel (%p183) target = $region16
        $region15: #{_lambda_.1} parent=11 // pred_region
          %s186 = smul.u32 2, %s22
          %p187 = scmp.lt.s32.totalorder %s186, 1
          %s188 = scalar_select %p187, %s186, 1
          %s189 = scalar_lea.vmem %s2, %s188
          %s190 = smul.u32 2, %s22
        $region16: #{_lambda_.1} parent=11 // pred_fallthru
          _
        // Predicated region
        $region17: #{_lambda_.1} parent=11 // pred_check
          %p191 = pneg %p140
        $region18: #{_lambda_.1} parent=11 // pred_check_branch
          %193 = sbr.rel (%p191) target = $region20
        $region19: #{_lambda_.1} parent=11 // pred_region
          %s194 = smul.u32 8, %s21
          %s195 = smul.u32 2, %s22
          %p196 = scmp.lt.s32.totalorder %s194, 7
          %s197 = scalar_select %p196, %s194, 7
          %p198 = scmp.lt.s32.totalorder %s195, 1
          %s199 = scalar_select %p198, %s195, 1
          %s200 = smul.addr %s197, 2
          %s201 = sadd.s32 %s199, %s200
          %s202 = smul.addr %s201, 4
          %s203 = scalar_lea.vmem %s3, %s202
          %s204 = smul.u32 8, %s21
          %s205 = smul.u32 2, %s22
        $region20: #{_lambda_.1} parent=11 // pred_fallthru
          _
      $region12: #{_lambda_.1} parent=5 // pred_fallthru
        _
      %p206 = scmp.lt.s32.totalorder %s11, 3
      // Predicated region
      $region21: #{_lambda_.1} parent=5 // pred_check
        %p207 = pneg %p206
      $region22: #{_lambda_.1} parent=5 // pred_check_branch
        %209 = sbr.rel (%p207) target = $region24
      $region23: #{_lambda_.1} parent=5 // pred_region
        // Predicated region
        $region25: #{_lambda_.1} parent=23 // pred_check
          %p210 = pneg %p52
        $region26: #{_lambda_.1} parent=23 // pred_check_branch
          %212 = sbr.rel (%p210) target = $region28
        $region27: #{_lambda_.1} parent=23 // pred_region
          %s213 = sand.u32 %s42, 1
          %s214 = sand.u32 %s42, 1
          %s215 = smul.addr %s214, 128
          %s216 = scalar_lea.vmem [#allocation3], %s215
          %s217 = smul.u32 8, %s18
          %s218 = smul.u32 4, %s20
          %s219 = smul.addr %s217, 12
          %s220 = sadd.s32 %s218, %s219
          %s221 = smul.addr %s220, 4
          %s222 = scalar_lea.vmem %s0, %s221
          // Predicated region
          $region29: #{_lambda_.1} parent=27 // pred_check
            _
          $region30: #{_lambda_.1} parent=27 // pred_check_branch
            %224 = sbr.rel (0) target = $region32
          $region31: #{_lambda_.1} parent=27 // pred_region
            // Predicated region
            $region33: #{_lambda_.1} parent=31 // pred_check
              _
            $region34: #{_lambda_.1} parent=31 // pred_check_branch
              %226 = sbr.rel (0) target = $region36
            $region35: #{_lambda_.1} parent=31 // pred_region
              loop: start=0, step=1, limit=1
              $region37: #{_lambda_.1} parent=35 // loop_pre_header
                _
              $region38: #{_lambda_.1} parent=35 // loop_header
                %s228 = sphi 0, %s232
                %p229 = scmp.ge.s32.totalorder %s228, 1
                %s233 = sphi %s222, %s222
                %s234 = sphi %s216, %s216
              $region39: #{_lambda_.1} parent=35 // loop_header_branch
                %231 = sbr.rel (%p229) target = $region43
              $region40: #{_lambda_.1} parent=35 // loop_body
                %v235 = vld [vmem:[%s233] sm:$0xff]
                %236 = vst [vmem:[%s234] sm:$0xff] %v235
                %v237 = vld [vmem:[%s233 + $0x8] sm:$0xff]
                %238 = vst [vmem:[%s234 + $0x8] sm:$0xff] %v237
                %v239 = vld [vmem:[%s233 + $0x30] sm:$0xff]
                %240 = vst [vmem:[%s234 + $0x10] sm:$0xff] %v239
                %v241 = vld [vmem:[%s233 + $0x38] sm:$0xff]
                %242 = vst [vmem:[%s234 + $0x18] sm:$0xff] %v241
                %v243 = vld [vmem:[%s233 + $0x60] sm:$0xff]
                %244 = vst [vmem:[%s234 + $0x20] sm:$0xff] %v243
                %v245 = vld [vmem:[%s233 + $0x68] sm:$0xff]
                %246 = vst [vmem:[%s234 + $0x28] sm:$0xff] %v245
                %v247 = vld [vmem:[%s233 + $0x90] sm:$0xff]
                %248 = vst [vmem:[%s234 + $0x30] sm:$0xff] %v247
                %v249 = vld [vmem:[%s233 + $0x98] sm:$0xff]
                %250 = vst [vmem:[%s234 + $0x38] sm:$0xff] %v249
                %v251 = vld [vmem:[%s233 + $0xc0] sm:$0xff]
                %252 = vst [vmem:[%s234 + $0x40] sm:$0xff] %v251
                %v253 = vld [vmem:[%s233 + $0xc8] sm:$0xff]
                %254 = vst [vmem:[%s234 + $0x48] sm:$0xff] %v253
                %v255 = vld [vmem:[%s233 + $0xf0] sm:$0xff]
                %256 = vst [vmem:[%s234 + $0x50] sm:$0xff] %v255
                %v257 = vld [vmem:[%s233 + $0xf8] sm:$0xff]
                %258 = vst [vmem:[%s234 + $0x58] sm:$0xff] %v257
                %v259 = vld [vmem:[%s233 + $0x120] sm:$0xff]
                %260 = vst [vmem:[%s234 + $0x60] sm:$0xff] %v259
                %v261 = vld [vmem:[%s233 + $0x128] sm:$0xff]
                %262 = vst [vmem:[%s234 + $0x68] sm:$0xff] %v261
                %v263 = vld [vmem:[%s233 + $0x150] sm:$0xff]
                %264 = vst [vmem:[%s234 + $0x70] sm:$0xff] %v263
                %v265 = vld [vmem:[%s233 + $0x158] sm:$0xff]
                %266 = vst [vmem:[%s234 + $0x78] sm:$0xff] %v265
              $region41: #{_lambda_.1} parent=35 // loop_footer
                %s232 = sadd.s32 1, %s228
              $region42: #{_lambda_.1} parent=35 // loop_footer_branch
                %227 = sbr.rel target = $region38
              $region43: #{_lambda_.1} parent=35 // loop_exit
                _
            $region36: #{_lambda_.1} parent=31 // pred_fallthru
              _
            // Predicated region
            $region44: #{_lambda_.1} parent=31 // pred_check
              _
            $region45: #{_lambda_.1} parent=31 // pred_check_branch
              %268 = sbr.rel target = $region47
            $region46: #{_lambda_.1} parent=31 // pred_region
              _
            $region47: #{_lambda_.1} parent=31 // pred_fallthru
              _
          $region32: #{_lambda_.1} parent=27 // pred_fallthru
            _
          %269 = vnop
        $region28: #{_lambda_.1} parent=23 // pred_fallthru
          _
        // Predicated region
        $region48: #{_lambda_.1} parent=23 // pred_check
          %p270 = pneg %p80
        $region49: #{_lambda_.1} parent=23 // pred_check_branch
          %272 = sbr.rel (%p270) target = $region51
        $region50: #{_lambda_.1} parent=23 // pred_region
          %s273 = smul.u32 64, %s20
          %s274 = smul.u32 2, %s19
          %p275 = scmp.lt.s32.totalorder %s273, 191
          %s276 = scalar_select %p275, %s273, 191
          %p277 = scmp.lt.s32.totalorder %s274, 1
          %s278 = scalar_select %p277, %s274, 1
          %s279 = smul.addr %s276, 2
          %s280 = sadd.s32 %s278, %s279
          %s281 = smul.addr %s280, 4
          %s282 = scalar_lea.vmem %s1, %s281
          %s283 = smul.u32 64, %s20
          %s284 = smul.u32 2, %s19
        $region51: #{_lambda_.1} parent=23 // pred_fallthru
          _
      $region24: #{_lambda_.1} parent=5 // pred_fallthru
        _
      %p285 = scmp.le.s32.totalorder 1, %s11
      %p286 = scmp.lt.s32.totalorder %s11, 4
      %p287 = pnand %p285, %p286
      %p288 = pneg %p287
      // Predicated region
      $region52: #{_lambda_.1} parent=5 // pred_check
        _
      $region53: #{_lambda_.1} parent=5 // pred_check_branch
        %290 = sbr.rel (%p287) target = $region55
      $region54: #{_lambda_.1} parent=5 // pred_region
        %s291 = ssub.s32 %s11, 1
        %s292 = sand.u32 %s45, 1
        %s293 = sand.u32 %s45, 1
        %s294 = smul.addr %s293, 128
        %s295 = scalar_lea.vmem [#allocation3], %s294
        // Predicated region
        $region56: #{_lambda_.1} parent=54 // pred_check
          %p296 = pneg %p58
        $region57: #{_lambda_.1} parent=54 // pred_check_branch
          %298 = sbr.rel (%p296) target = $region59
        $region58: #{_lambda_.1} parent=54 // pred_region
          _
        $region59: #{_lambda_.1} parent=54 // pred_fallthru
          _
        %s299 = sand.u32 %s45, 1
        %s300 = sand.u32 %s45, 1
        %s301 = smul.addr %s300, 128
        %s302 = scalar_lea.vmem [#allocation3], %s301
        %p303 = pneg %p58
        %p304 = pneg %p55
        %s305 = smul.u32 64, %s23
        %s306 = smul.u32 2, %s22
        %p307 = scmp.lt.s32.totalorder %s305, 191
        %s308 = scalar_select %p307, %s305, 191
        %p309 = scmp.lt.s32.totalorder %s306, 1
        %s310 = scalar_select %p309, %s306, 1
        %s311 = smul.addr %s308, 2
        %s312 = sadd.s32 %s310, %s311
        %s313 = smul.addr %s312, 4
        %s314 = scalar_lea.vmem %s1, %s313
        %p315 = pneg %p86
        %p316 = pneg %p83
        %s317 = smul.u32 2, %s22
        %p318 = scmp.lt.s32.totalorder %s317, 1
        %s319 = scalar_select %p318, %s317, 1
        %s320 = scalar_lea.vmem %s2, %s319
        %p321 = pneg %p112
        %p322 = pneg %p109
        %s323 = smul.u32 8, %s21
        %s324 = smul.u32 2, %s22
        %p325 = scmp.lt.s32.totalorder %s323, 7
        %s326 = scalar_select %p325, %s323, 7
        %p327 = scmp.lt.s32.totalorder %s324, 1
        %s328 = scalar_select %p327, %s324, 1
        %s329 = smul.addr %s326, 2
        %s330 = sadd.s32 %s328, %s329
        %s331 = smul.addr %s330, 4
        %s332 = scalar_lea.vmem %s3, %s331
        %p333 = pneg %p140
        %p334 = pneg %p137
        %p335 = pneg %p168
        %p336 = pneg %p165
        %s337 = smul.u32 8, %s21
        %s338 = smul.u32 4, %s23
        %s339 = smul.u32 64, %s23
        %s340 = smul.u32 2, %s22
        %p341 = scmp.lt.s32.totalorder %s339, 191
        %s342 = scalar_select %p341, %s339, 191
        %p343 = scmp.lt.s32.totalorder %s340, 1
        %s344 = scalar_select %p343, %s340, 1
        %s345 = smul.addr %s342, 2
        %s346 = sadd.s32 %s344, %s345
        %s347 = smul.addr %s346, 4
        %s348 = scalar_lea.vmem %s1, %s347
        %s349 = smul.u32 64, %s23
        %s350 = smul.u32 2, %s22
        %s351 = smul.u32 2, %s22
        %p352 = scmp.lt.s32.totalorder %s351, 1
        %s353 = scalar_select %p352, %s351, 1
        %s354 = scalar_lea.vmem %s2, %s353
        %s355 = smul.u32 2, %s22
        %s356 = smul.u32 8, %s21
        %s357 = smul.u32 2, %s22
        %p358 = scmp.lt.s32.totalorder %s356, 7
        %s359 = scalar_select %p358, %s356, 7
        %p360 = scmp.lt.s32.totalorder %s357, 1
        %s361 = scalar_select %p360, %s357, 1
        %s362 = smul.addr %s359, 2
        %s363 = sadd.s32 %s361, %s362
        %s364 = smul.addr %s363, 4
        %s365 = scalar_lea.vmem %s3, %s364
        %s366 = smul.u32 8, %s21
        %s367 = smul.u32 2, %s22
        %s368 = smul.u32 8, %s21
        %s369 = smul.u32 2, %s22
        %v370 = vld [vmem:[%s295] sm:$0xff]
        %v371 = vld [vmem:[%s295 + $0x8] sm:$0xff]
        %v372 = vld [vmem:[%s295 + $0x10] sm:$0xff]
        %v373 = vld [vmem:[%s295 + $0x18] sm:$0xff]
        %v374 = vld [vmem:[%s295 + $0x20] sm:$0xff]
        %v375 = vld [vmem:[%s295 + $0x28] sm:$0xff]
        %v376 = vld [vmem:[%s295 + $0x30] sm:$0xff]
        %v377 = vld [vmem:[%s295 + $0x38] sm:$0xff]
        %v378 = vld [vmem:[%s295 + $0x40] sm:$0xff]
        %v379 = vld [vmem:[%s295 + $0x48] sm:$0xff]
        %v380 = vld [vmem:[%s295 + $0x50] sm:$0xff]
        %v381 = vld [vmem:[%s295 + $0x58] sm:$0xff]
        %v382 = vld [vmem:[%s295 + $0x60] sm:$0xff]
        %v383 = vld [vmem:[%s295 + $0x68] sm:$0xff]
        %v384 = vld [vmem:[%s295 + $0x70] sm:$0xff]
        %v385 = vld [vmem:[%s295 + $0x78] sm:$0xff]
        %p386 = scmp.eq.s32.totalorder %s23, 0
        // Predicated region
        $region60: #{_lambda_.1} parent=54 // pred_check
          %p387 = pneg %p386
        $region61: #{_lambda_.1} parent=54 // pred_check_branch
          %389 = sbr.rel (%p387) target = $region63
        $region62: #{_lambda_.1} parent=54 // pred_region
          %390 = vst [vmem:[#allocation2] sm:$0xff] 0.0
          %391 = vst [vmem:[#allocation2 + $0x8] sm:$0xff] 0.0
          %392 = vst [vmem:[#allocation2 + $0x10] sm:$0xff] 0.0
          %393 = vst [vmem:[#allocation2 + $0x18] sm:$0xff] 0.0
          %394 = vst [vmem:[#allocation2 + $0x20] sm:$0xff] 0.0
          %395 = vst [vmem:[#allocation2 + $0x28] sm:$0xff] 0.0
          %396 = vst [vmem:[#allocation2 + $0x30] sm:$0xff] 0.0
          %397 = vst [vmem:[#allocation2 + $0x38] sm:$0xff] 0.0
          %398 = vst [vmem:[#allocation2 + $0x40] sm:$0xff] 0.0
          %399 = vst [vmem:[#allocation2 + $0x48] sm:$0xff] 0.0
          %400 = vst [vmem:[#allocation2 + $0x50] sm:$0xff] 0.0
          %401 = vst [vmem:[#allocation2 + $0x58] sm:$0xff] 0.0
          %402 = vst [vmem:[#allocation2 + $0x60] sm:$0xff] 0.0
          %403 = vst [vmem:[#allocation2 + $0x68] sm:$0xff] 0.0
          %404 = vst [vmem:[#allocation2 + $0x70] sm:$0xff] 0.0
          %405 = vst [vmem:[#allocation2 + $0x78] sm:$0xff] 0.0
        $region63: #{_lambda_.1} parent=54 // pred_fallthru
          _
        %v406 = vld [vmem:[#allocation2] sm:$0xff]
        %v407 = vld [vmem:[#allocation2 + $0x8] sm:$0xff]
        %v408 = vld [vmem:[#allocation2 + $0x10] sm:$0xff]
        %v409 = vld [vmem:[#allocation2 + $0x18] sm:$0xff]
        %v410 = vld [vmem:[#allocation2 + $0x20] sm:$0xff]
        %v411 = vld [vmem:[#allocation2 + $0x28] sm:$0xff]
        %v412 = vld [vmem:[#allocation2 + $0x30] sm:$0xff]
        %v413 = vld [vmem:[#allocation2 + $0x38] sm:$0xff]
        %v414 = vld [vmem:[#allocation2 + $0x40] sm:$0xff]
        %v415 = vld [vmem:[#allocation2 + $0x48] sm:$0xff]
        %v416 = vld [vmem:[#allocation2 + $0x50] sm:$0xff]
        %v417 = vld [vmem:[#allocation2 + $0x58] sm:$0xff]
        %v418 = vld [vmem:[#allocation2 + $0x60] sm:$0xff]
        %v419 = vld [vmem:[#allocation2 + $0x68] sm:$0xff]
        %v420 = vld [vmem:[#allocation2 + $0x70] sm:$0xff]
        %v421 = vld [vmem:[#allocation2 + $0x78] sm:$0xff]
        %v422 = vld [vmem:[%s348] sm:$0xff]
        %v423 = vld [vmem:[%s348 + $0x8] sm:$0xff]
        %v424 = vld [vmem:[%s348 + $0x10] sm:$0xff]
        %v425 = vld [vmem:[%s348 + $0x18] sm:$0xff]
        %v426 = vld [vmem:[%s348 + $0x20] sm:$0xff]
        %v427 = vld [vmem:[%s348 + $0x28] sm:$0xff]
        %v428 = vld [vmem:[%s348 + $0x30] sm:$0xff]
        %v429 = vld [vmem:[%s348 + $0x38] sm:$0xff]
        %v430 = vld [vmem:[%s348 + $0x40] sm:$0xff]
        %v431 = vld [vmem:[%s348 + $0x48] sm:$0xff]
        %v432 = vld [vmem:[%s348 + $0x50] sm:$0xff]
        %v433 = vld [vmem:[%s348 + $0x58] sm:$0xff]
        %v434 = vld [vmem:[%s348 + $0x60] sm:$0xff]
        %v435 = vld [vmem:[%s348 + $0x68] sm:$0xff]
        %v436 = vld [vmem:[%s348 + $0x70] sm:$0xff]
        %v437 = vld [vmem:[%s348 + $0x78] sm:$0xff]
        %v438 = vld [vmem:[%s348 + $0x80] sm:$0xff]
        %v439 = vld [vmem:[%s348 + $0x88] sm:$0xff]
        %v440 = vld [vmem:[%s348 + $0x90] sm:$0xff]
        %v441 = vld [vmem:[%s348 + $0x98] sm:$0xff]
        %v442 = vld [vmem:[%s348 + $0xa0] sm:$0xff]
        %v443 = vld [vmem:[%s348 + $0xa8] sm:$0xff]
        %v444 = vld [vmem:[%s348 + $0xb0] sm:$0xff]
        %v445 = vld [vmem:[%s348 + $0xb8] sm:$0xff]
        %v446 = vld [vmem:[%s348 + $0xc0] sm:$0xff]
        %v447 = vld [vmem:[%s348 + $0xc8] sm:$0xff]
        %v448 = vld [vmem:[%s348 + $0xd0] sm:$0xff]
        %v449 = vld [vmem:[%s348 + $0xd8] sm:$0xff]
        %v450 = vld [vmem:[%s348 + $0xe0] sm:$0xff]
        %v451 = vld [vmem:[%s348 + $0xe8] sm:$0xff]
        %v452 = vld [vmem:[%s348 + $0xf0] sm:$0xff]
        %v453 = vld [vmem:[%s348 + $0xf8] sm:$0xff]
        %v454 = vld [vmem:[%s348 + $0x100] sm:$0xff]
        %v455 = vld [vmem:[%s348 + $0x108] sm:$0xff]
        %v456 = vld [vmem:[%s348 + $0x110] sm:$0xff]
        %v457 = vld [vmem:[%s348 + $0x118] sm:$0xff]
        %v458 = vld [vmem:[%s348 + $0x120] sm:$0xff]
        %v459 = vld [vmem:[%s348 + $0x128] sm:$0xff]
        %v460 = vld [vmem:[%s348 + $0x130] sm:$0xff]
        %v461 = vld [vmem:[%s348 + $0x138] sm:$0xff]
        %v462 = vld [vmem:[%s348 + $0x140] sm:$0xff]
        %v463 = vld [vmem:[%s348 + $0x148] sm:$0xff]
        %v464 = vld [vmem:[%s348 + $0x150] sm:$0xff]
        %v465 = vld [vmem:[%s348 + $0x158] sm:$0xff]
        %v466 = vld [vmem:[%s348 + $0x160] sm:$0xff]
        %v467 = vld [vmem:[%s348 + $0x168] sm:$0xff]
        %v468 = vld [vmem:[%s348 + $0x170] sm:$0xff]
        %v469 = vld [vmem:[%s348 + $0x178] sm:$0xff]
        %v470 = vld [vmem:[%s348 + $0x180] sm:$0xff]
        %v471 = vld [vmem:[%s348 + $0x188] sm:$0xff]
        %v472 = vld [vmem:[%s348 + $0x190] sm:$0xff]
        %v473 = vld [vmem:[%s348 + $0x198] sm:$0xff]
        %v474 = vld [vmem:[%s348 + $0x1a0] sm:$0xff]
        %v475 = vld [vmem:[%s348 + $0x1a8] sm:$0xff]
        %v476 = vld [vmem:[%s348 + $0x1b0] sm:$0xff]
        %v477 = vld [vmem:[%s348 + $0x1b8] sm:$0xff]
        %v478 = vld [vmem:[%s348 + $0x1c0] sm:$0xff]
        %v479 = vld [vmem:[%s348 + $0x1c8] sm:$0xff]
        %v480 = vld [vmem:[%s348 + $0x1d0] sm:$0xff]
        %v481 = vld [vmem:[%s348 + $0x1d8] sm:$0xff]
        %v482 = vld [vmem:[%s348 + $0x1e0] sm:$0xff]
        %v483 = vld [vmem:[%s348 + $0x1e8] sm:$0xff]
        %v484 = vld [vmem:[%s348 + $0x1f0] sm:$0xff]
        %v485 = vld [vmem:[%s348 + $0x1f8] sm:$0xff]
        %v502 = vunpack.c.l.b16 %v370
        %v503 = vunpack.c.h.b16 %v370
        %v504 = vunpack.c.l.b16 %v371
        %v505 = vunpack.c.h.b16 %v371
        %v506 = vunpack.c.l.b16 %v372
        %v507 = vunpack.c.h.b16 %v372
        %v508 = vunpack.c.l.b16 %v373
        %v509 = vunpack.c.h.b16 %v373
        %v510 = vunpack.c.l.b16 %v374
        %v511 = vunpack.c.h.b16 %v374
        %v512 = vunpack.c.l.b16 %v375
        %v513 = vunpack.c.h.b16 %v375
        %v514 = vunpack.c.l.b16 %v376
        %v515 = vunpack.c.h.b16 %v376
        %v516 = vunpack.c.l.b16 %v377
        %v517 = vunpack.c.h.b16 %v377
        %v518 = vunpack.c.l.b16 %v378
        %v519 = vunpack.c.h.b16 %v378
        %v520 = vunpack.c.l.b16 %v379
        %v521 = vunpack.c.h.b16 %v379
        %v522 = vunpack.c.l.b16 %v380
        %v523 = vunpack.c.h.b16 %v380
        %v524 = vunpack.c.l.b16 %v381
        %v525 = vunpack.c.h.b16 %v381
        %v526 = vunpack.c.l.b16 %v382
        %v527 = vunpack.c.h.b16 %v382
        %v528 = vunpack.c.l.b16 %v383
        %v529 = vunpack.c.h.b16 %v383
        %v530 = vunpack.c.l.b16 %v384
        %v531 = vunpack.c.h.b16 %v384
        %v532 = vunpack.c.l.b16 %v385
        %v533 = vunpack.c.h.b16 %v385
        %v534 = vpack.c.b16 %v506, %v502
        %v535 = vpack.c.b16 %v507, %v503
        %v536 = vpack.c.b16 %v508, %v504
        %v537 = vpack.c.b16 %v509, %v505
        %v538 = vpack.c.b16 %v514, %v510
        %v539 = vpack.c.b16 %v515, %v511
        %v540 = vpack.c.b16 %v516, %v512
        %v541 = vpack.c.b16 %v517, %v513
        %v542 = vpack.c.b16 %v522, %v518
        %v543 = vpack.c.b16 %v523, %v519
        %v544 = vpack.c.b16 %v524, %v520
        %v545 = vpack.c.b16 %v525, %v521
        %v546 = vpack.c.b16 %v530, %v526
        %v547 = vpack.c.b16 %v531, %v527
        %v548 = vpack.c.b16 %v532, %v528
        %v549 = vpack.c.b16 %v533, %v529
        %v630 = vunpack.c.l.b16 %v422
        %v631 = vunpack.c.h.b16 %v422
        %v632 = vunpack.c.l.b16 %v423
        %v633 = vunpack.c.h.b16 %v423
        %v634 = vunpack.c.l.b16 %v424
        %v635 = vunpack.c.h.b16 %v424
        %v636 = vunpack.c.l.b16 %v425
        %v637 = vunpack.c.h.b16 %v425
        %v638 = vunpack.c.l.b16 %v426
        %v639 = vunpack.c.h.b16 %v426
        %v640 = vunpack.c.l.b16 %v427
        %v641 = vunpack.c.h.b16 %v427
        %v642 = vunpack.c.l.b16 %v428
        %v643 = vunpack.c.h.b16 %v428
        %v644 = vunpack.c.l.b16 %v429
        %v645 = vunpack.c.h.b16 %v429
        %v646 = vunpack.c.l.b16 %v430
        %v647 = vunpack.c.h.b16 %v430
        %v648 = vunpack.c.l.b16 %v431
        %v649 = vunpack.c.h.b16 %v431
        %v650 = vunpack.c.l.b16 %v432
        %v651 = vunpack.c.h.b16 %v432
        %v652 = vunpack.c.l.b16 %v433
        %v653 = vunpack.c.h.b16 %v433
        %v654 = vunpack.c.l.b16 %v434
        %v655 = vunpack.c.h.b16 %v434
        %v656 = vunpack.c.l.b16 %v435
        %v657 = vunpack.c.h.b16 %v435
        %v658 = vunpack.c.l.b16 %v436
        %v659 = vunpack.c.h.b16 %v436
        %v660 = vunpack.c.l.b16 %v437
        %v661 = vunpack.c.h.b16 %v437
        %v662 = vunpack.c.l.b16 %v438
        %v663 = vunpack.c.h.b16 %v438
        %v664 = vunpack.c.l.b16 %v439
        %v665 = vunpack.c.h.b16 %v439
        %v666 = vunpack.c.l.b16 %v440
        %v667 = vunpack.c.h.b16 %v440
        %v668 = vunpack.c.l.b16 %v441
        %v669 = vunpack.c.h.b16 %v441
        %v670 = vunpack.c.l.b16 %v442
        %v671 = vunpack.c.h.b16 %v442
        %v672 = vunpack.c.l.b16 %v443
        %v673 = vunpack.c.h.b16 %v443
        %v674 = vunpack.c.l.b16 %v444
        %v675 = vunpack.c.h.b16 %v444
        %v676 = vunpack.c.l.b16 %v445
        %v677 = vunpack.c.h.b16 %v445
        %v678 = vunpack.c.l.b16 %v446
        %v679 = vunpack.c.h.b16 %v446
        %v680 = vunpack.c.l.b16 %v447
        %v681 = vunpack.c.h.b16 %v447
        %v682 = vunpack.c.l.b16 %v448
        %v683 = vunpack.c.h.b16 %v448
        %v684 = vunpack.c.l.b16 %v449
        %v685 = vunpack.c.h.b16 %v449
        %v686 = vunpack.c.l.b16 %v450
        %v687 = vunpack.c.h.b16 %v450
        %v688 = vunpack.c.l.b16 %v451
        %v689 = vunpack.c.h.b16 %v451
        %v690 = vunpack.c.l.b16 %v452
        %v691 = vunpack.c.h.b16 %v452
        %v692 = vunpack.c.l.b16 %v453
        %v693 = vunpack.c.h.b16 %v453
        %v694 = vunpack.c.l.b16 %v454
        %v695 = vunpack.c.h.b16 %v454
        %v696 = vunpack.c.l.b16 %v455
        %v697 = vunpack.c.h.b16 %v455
        %v698 = vunpack.c.l.b16 %v456
        %v699 = vunpack.c.h.b16 %v456
        %v700 = vunpack.c.l.b16 %v457
        %v701 = vunpack.c.h.b16 %v457
        %v702 = vunpack.c.l.b16 %v458
        %v703 = vunpack.c.h.b16 %v458
        %v704 = vunpack.c.l.b16 %v459
        %v705 = vunpack.c.h.b16 %v459
        %v706 = vunpack.c.l.b16 %v460
        %v707 = vunpack.c.h.b16 %v460
        %v708 = vunpack.c.l.b16 %v461
        %v709 = vunpack.c.h.b16 %v461
        %v710 = vunpack.c.l.b16 %v462
        %v711 = vunpack.c.h.b16 %v462
        %v712 = vunpack.c.l.b16 %v463
        %v713 = vunpack.c.h.b16 %v463
        %v714 = vunpack.c.l.b16 %v464
        %v715 = vunpack.c.h.b16 %v464
        %v716 = vunpack.c.l.b16 %v465
        %v717 = vunpack.c.h.b16 %v465
        %v718 = vunpack.c.l.b16 %v466
        %v719 = vunpack.c.h.b16 %v466
        %v720 = vunpack.c.l.b16 %v467
        %v721 = vunpack.c.h.b16 %v467
        %v722 = vunpack.c.l.b16 %v468
        %v723 = vunpack.c.h.b16 %v468
        %v724 = vunpack.c.l.b16 %v469
        %v725 = vunpack.c.h.b16 %v469
        %v726 = vunpack.c.l.b16 %v470
        %v727 = vunpack.c.h.b16 %v470
        %v728 = vunpack.c.l.b16 %v471
        %v729 = vunpack.c.h.b16 %v471
        %v730 = vunpack.c.l.b16 %v472
        %v731 = vunpack.c.h.b16 %v472
        %v732 = vunpack.c.l.b16 %v473
        %v733 = vunpack.c.h.b16 %v473
        %v734 = vunpack.c.l.b16 %v474
        %v735 = vunpack.c.h.b16 %v474
        %v736 = vunpack.c.l.b16 %v475
        %v737 = vunpack.c.h.b16 %v475
        %v738 = vunpack.c.l.b16 %v476
        %v739 = vunpack.c.h.b16 %v476
        %v740 = vunpack.c.l.b16 %v477
        %v741 = vunpack.c.h.b16 %v477
        %v742 = vunpack.c.l.b16 %v478
        %v743 = vunpack.c.h.b16 %v478
        %v744 = vunpack.c.l.b16 %v479
        %v745 = vunpack.c.h.b16 %v479
        %v746 = vunpack.c.l.b16 %v480
        %v747 = vunpack.c.h.b16 %v480
        %v748 = vunpack.c.l.b16 %v481
        %v749 = vunpack.c.h.b16 %v481
        %v750 = vunpack.c.l.b16 %v482
        %v751 = vunpack.c.h.b16 %v482
        %v752 = vunpack.c.l.b16 %v483
        %v753 = vunpack.c.h.b16 %v483
        %v754 = vunpack.c.l.b16 %v484
        %v755 = vunpack.c.h.b16 %v484
        %v756 = vunpack.c.l.b16 %v485
        %v757 = vunpack.c.h.b16 %v485
        %v758 = vpack.c.b16 %v632, %v630
        %v759 = vpack.c.b16 %v633, %v631
        %v760 = vpack.c.b16 %v636, %v634
        %v761 = vpack.c.b16 %v637, %v635
        %v762 = vpack.c.b16 %v640, %v638
        %v763 = vpack.c.b16 %v641, %v639
        %v764 = vpack.c.b16 %v644, %v642
        %v765 = vpack.c.b16 %v645, %v643
        %v766 = vpack.c.b16 %v648, %v646
        %v767 = vpack.c.b16 %v649, %v647
        %v768 = vpack.c.b16 %v652, %v650
        %v769 = vpack.c.b16 %v653, %v651
        %v770 = vpack.c.b16 %v656, %v654
        %v771 = vpack.c.b16 %v657, %v655
        %v772 = vpack.c.b16 %v660, %v658
        %v773 = vpack.c.b16 %v661, %v659
        %v774 = vpack.c.b16 %v664, %v662
        %v775 = vpack.c.b16 %v665, %v663
        %v776 = vpack.c.b16 %v668, %v666
        %v777 = vpack.c.b16 %v669, %v667
        %v778 = vpack.c.b16 %v672, %v670
        %v779 = vpack.c.b16 %v673, %v671
        %v780 = vpack.c.b16 %v676, %v674
        %v781 = vpack.c.b16 %v677, %v675
        %v782 = vpack.c.b16 %v680, %v678
        %v783 = vpack.c.b16 %v681, %v679
        %v784 = vpack.c.b16 %v684, %v682
        %v785 = vpack.c.b16 %v685, %v683
        %v786 = vpack.c.b16 %v688, %v686
        %v787 = vpack.c.b16 %v689, %v687
        %v788 = vpack.c.b16 %v692, %v690
        %v789 = vpack.c.b16 %v693, %v691
        %v790 = vpack.c.b16 %v696, %v694
        %v791 = vpack.c.b16 %v697, %v695
        %v792 = vpack.c.b16 %v700, %v698
        %v793 = vpack.c.b16 %v701, %v699
        %v794 = vpack.c.b16 %v704, %v702
        %v795 = vpack.c.b16 %v705, %v703
        %v796 = vpack.c.b16 %v708, %v706
        %v797 = vpack.c.b16 %v709, %v707
        %v798 = vpack.c.b16 %v712, %v710
        %v799 = vpack.c.b16 %v713, %v711
        %v800 = vpack.c.b16 %v716, %v714
        %v801 = vpack.c.b16 %v717, %v715
        %v802 = vpack.c.b16 %v720, %v718
        %v803 = vpack.c.b16 %v721, %v719
        %v804 = vpack.c.b16 %v724, %v722
        %v805 = vpack.c.b16 %v725, %v723
        %v806 = vpack.c.b16 %v728, %v726
        %v807 = vpack.c.b16 %v729, %v727
        %v808 = vpack.c.b16 %v732, %v730
        %v809 = vpack.c.b16 %v733, %v731
        %v810 = vpack.c.b16 %v736, %v734
        %v811 = vpack.c.b16 %v737, %v735
        %v812 = vpack.c.b16 %v740, %v738
        %v813 = vpack.c.b16 %v741, %v739
        %v814 = vpack.c.b16 %v744, %v742
        %v815 = vpack.c.b16 %v745, %v743
        %v816 = vpack.c.b16 %v748, %v746
        %v817 = vpack.c.b16 %v749, %v747
        %v818 = vpack.c.b16 %v752, %v750
        %v819 = vpack.c.b16 %v753, %v751
        %v820 = vpack.c.b16 %v756, %v754
        %v821 = vpack.c.b16 %v757, %v755
        %886 = vmatprep.subr.bf16.mxu0 %v759
        %887 = vmatpush1.bf16.msra.mxu0 %v758
        %888 = vmatprep.subr.bf16.mxu0 %v761
        %889 = vmatpush1.bf16.msra.mxu0 %v760
        %890 = vmatprep.subr.bf16.mxu0 %v763
        %891 = vmatpush1.bf16.msra.mxu0 %v762
        %892 = vmatprep.subr.bf16.mxu0 %v765
        %893 = vmatpush1.bf16.msra.mxu0 %v764
        %894 = vmatprep.subr.bf16.mxu0 %v767
        %895 = vmatpush1.bf16.msra.mxu0 %v766
        %896 = vmatprep.subr.bf16.mxu0 %v769
        %897 = vmatpush1.bf16.msra.mxu0 %v768
        %898 = vmatprep.subr.bf16.mxu0 %v771
        %899 = vmatpush1.bf16.msra.mxu0 %v770
        %900 = vmatprep.subr.bf16.mxu0 %v773
        %901 = vmatpush1.bf16.msra.mxu0 %v772
        %902 = vmatprep.subr.bf16.mxu0 %v775
        %903 = vmatpush1.bf16.msra.mxu0 %v774
        %904 = vmatprep.subr.bf16.mxu0 %v777
        %905 = vmatpush1.bf16.msra.mxu0 %v776
        %906 = vmatprep.subr.bf16.mxu0 %v779
        %907 = vmatpush1.bf16.msra.mxu0 %v778
        %908 = vmatprep.subr.bf16.mxu0 %v781
        %909 = vmatpush1.bf16.msra.mxu0 %v780
        %910 = vmatprep.subr.bf16.mxu0 %v783
        %911 = vmatpush1.bf16.msra.mxu0 %v782
        %912 = vmatprep.subr.bf16.mxu0 %v785
        %913 = vmatpush1.bf16.msra.mxu0 %v784
        %914 = vmatprep.subr.bf16.mxu0 %v787
        %915 = vmatpush1.bf16.msra.mxu0 %v786
        %916 = vmatprep.subr.bf16.mxu0 %v789
        %917 = vmatpush1.bf16.msra.mxu0 %v788
        %918 = vmatprep.mubr.bf16.mxu0 %v535
        %919 = vmatmul.mubr.bf16.gmra.mrb[0].mxu0 %v534
        %v920 = vpop.f32.mrb[0].mxu0
        %v921 = vadd.f32 0.0, %v920
        %v922 = vpop.f32.mrb[0].mxu0
        %v923 = vadd.f32 0.0, %v922
        %v924 = vpop.f32.mrb[0].mxu0
        %v925 = vadd.f32 0.0, %v924
        %v926 = vpop.f32.mrb[0].mxu0
        %v927 = vadd.f32 0.0, %v926
        %928 = vmatprep.mubr.bf16.mxu0 %v539
        %929 = vmatmul.mubr.bf16.gmra.mrb[0].mxu0 %v538
        %v930 = vpop.f32.mrb[0].mxu0
        %v931 = vadd.f32 0.0, %v930
        %v932 = vpop.f32.mrb[0].mxu0
        %v933 = vadd.f32 0.0, %v932
        %v934 = vpop.f32.mrb[0].mxu0
        %v935 = vadd.f32 0.0, %v934
        %v936 = vpop.f32.mrb[0].mxu0
        %v937 = vadd.f32 0.0, %v936
        %938 = vmatprep.mubr.bf16.mxu0 %v543
        %939 = vmatmul.mubr.bf16.gmra.mrb[0].mxu0 %v542
        %v940 = vpop.f32.mrb[0].mxu0
        %v941 = vadd.f32 0.0, %v940
        %v942 = vpop.f32.mrb[0].mxu0
        %v943 = vadd.f32 0.0, %v942
        %v944 = vpop.f32.mrb[0].mxu0
        %v945 = vadd.f32 0.0, %v944
        %v946 = vpop.f32.mrb[0].mxu0
        %v947 = vadd.f32 0.0, %v946
        %948 = vmatprep.mubr.bf16.mxu0 %v547
        %949 = vmatmul.mubr.bf16.gmra.mrb[0].mxu0 %v546
        %v950 = vpop.f32.mrb[0].mxu0
        %v951 = vadd.f32 0.0, %v950
        %v952 = vpop.f32.mrb[0].mxu0
        %v953 = vadd.f32 0.0, %v952
        %v954 = vpop.f32.mrb[0].mxu0
        %v955 = vadd.f32 0.0, %v954
        %v956 = vpop.f32.mrb[0].mxu0
        %v957 = vadd.f32 0.0, %v956
        %958 = vdwg.mxu0
        %959 = vmatprep.subr.bf16.mxu0 %v791
        %960 = vmatpush1.bf16.msra.mxu0 %v790
        %961 = vmatprep.subr.bf16.mxu0 %v793
        %962 = vmatpush1.bf16.msra.mxu0 %v792
        %963 = vmatprep.subr.bf16.mxu0 %v795
        %964 = vmatpush1.bf16.msra.mxu0 %v794
        %965 = vmatprep.subr.bf16.mxu0 %v797
        %966 = vmatpush1.bf16.msra.mxu0 %v796
        %967 = vmatprep.subr.bf16.mxu0 %v799
        %968 = vmatpush1.bf16.msra.mxu0 %v798
        %969 = vmatprep.subr.bf16.mxu0 %v801
        %970 = vmatpush1.bf16.msra.mxu0 %v800
        %971 = vmatprep.subr.bf16.mxu0 %v803
        %972 = vmatpush1.bf16.msra.mxu0 %v802
        %973 = vmatprep.subr.bf16.mxu0 %v805
        %974 = vmatpush1.bf16.msra.mxu0 %v804
        %975 = vmatprep.subr.bf16.mxu0 %v807
        %976 = vmatpush1.bf16.msra.mxu0 %v806
        %977 = vmatprep.subr.bf16.mxu0 %v809
        %978 = vmatpush1.bf16.msra.mxu0 %v808
        %979 = vmatprep.subr.bf16.mxu0 %v811
        %980 = vmatpush1.bf16.msra.mxu0 %v810
        %981 = vmatprep.subr.bf16.mxu0 %v813
        %982 = vmatpush1.bf16.msra.mxu0 %v812
        %983 = vmatprep.subr.bf16.mxu0 %v815
        %984 = vmatpush1.bf16.msra.mxu0 %v814
        %985 = vmatprep.subr.bf16.mxu0 %v817
        %986 = vmatpush1.bf16.msra.mxu0 %v816
        %987 = vmatprep.subr.bf16.mxu0 %v819
        %988 = vmatpush1.bf16.msra.mxu0 %v818
        %989 = vmatprep.subr.bf16.mxu0 %v821
        %990 = vmatpush1.bf16.msra.mxu0 %v820
        %991 = vmatprep.mubr.bf16.mxu0 %v537
        %992 = vmatmul.mubr.bf16.gmra.mrb[0].mxu0 %v536
        %v993 = vpop.f32.mrb[0].mxu0
        %v994 = vadd.f32 %v921, %v993
        %v995 = vpop.f32.mrb[0].mxu0
        %v996 = vadd.f32 %v923, %v995
        %v997 = vpop.f32.mrb[0].mxu0
        %v998 = vadd.f32 %v925, %v997
        %v999 = vpop.f32.mrb[0].mxu0
        %v1000 = vadd.f32 %v927, %v999
        %1001 = vmatprep.mubr.bf16.mxu0 %v541
        %1002 = vmatmul.mubr.bf16.gmra.mrb[0].mxu0 %v540
        %v1003 = vpop.f32.mrb[0].mxu0
        %v1004 = vadd.f32 %v931, %v1003
        %v1005 = vpop.f32.mrb[0].mxu0
        %v1006 = vadd.f32 %v933, %v1005
        %v1007 = vpop.f32.mrb[0].mxu0
        %v1008 = vadd.f32 %v935, %v1007
        %v1009 = vpop.f32.mrb[0].mxu0
        %v1010 = vadd.f32 %v937, %v1009
        %1011 = vmatprep.mubr.bf16.mxu0 %v545
        %1012 = vmatmul.mubr.bf16.gmra.mrb[0].mxu0 %v544
        %v1013 = vpop.f32.mrb[0].mxu0
        %v1014 = vadd.f32 %v941, %v1013
        %v1015 = vpop.f32.mrb[0].mxu0
        %v1016 = vadd.f32 %v943, %v1015
        %v1017 = vpop.f32.mrb[0].mxu0
        %v1018 = vadd.f32 %v945, %v1017
        %v1019 = vpop.f32.mrb[0].mxu0
        %v1020 = vadd.f32 %v947, %v1019
        %1021 = vmatprep.mubr.bf16.mxu0 %v549
        %1022 = vmatmul.mubr.bf16.gmra.mrb[0].mxu0 %v548
        %v1023 = vpop.f32.mrb[0].mxu0
        %v1024 = vadd.f32 %v951, %v1023
        %v1025 = vpop.f32.mrb[0].mxu0
        %v1026 = vadd.f32 %v953, %v1025
        %v1027 = vpop.f32.mrb[0].mxu0
        %v1028 = vadd.f32 %v955, %v1027
        %v1029 = vpop.f32.mrb[0].mxu0
        %v1030 = vadd.f32 %v957, %v1029
        %1031 = vdwg.mxu0
        %v1032 = vadd.f32 %v406, %v994
        %v1033 = vadd.f32 %v407, %v996
        %v1034 = vadd.f32 %v408, %v998
        %v1035 = vadd.f32 %v409, %v1000
        %v1036 = vadd.f32 %v410, %v1004
        %v1037 = vadd.f32 %v411, %v1006
        %v1038 = vadd.f32 %v412, %v1008
        %v1039 = vadd.f32 %v413, %v1010
        %v1040 = vadd.f32 %v414, %v1014
        %v1041 = vadd.f32 %v415, %v1016
        %v1042 = vadd.f32 %v416, %v1018
        %v1043 = vadd.f32 %v417, %v1020
        %v1044 = vadd.f32 %v418, %v1024
        %v1045 = vadd.f32 %v419, %v1026
        %v1046 = vadd.f32 %v420, %v1028
        %v1047 = vadd.f32 %v421, %v1030
        %1048 = vst [vmem:[#allocation2] sm:$0xff] %v1032
        %1049 = vst [vmem:[#allocation2 + $0x8] sm:$0xff] %v1033
        %1050 = vst [vmem:[#allocation2 + $0x10] sm:$0xff] %v1034
        %1051 = vst [vmem:[#allocation2 + $0x18] sm:$0xff] %v1035
        %1052 = vst [vmem:[#allocation2 + $0x20] sm:$0xff] %v1036
        %1053 = vst [vmem:[#allocation2 + $0x28] sm:$0xff] %v1037
        %1054 = vst [vmem:[#allocation2 + $0x30] sm:$0xff] %v1038
        %1055 = vst [vmem:[#allocation2 + $0x38] sm:$0xff] %v1039
        %1056 = vst [vmem:[#allocation2 + $0x40] sm:$0xff] %v1040
        %1057 = vst [vmem:[#allocation2 + $0x48] sm:$0xff] %v1041
        %1058 = vst [vmem:[#allocation2 + $0x50] sm:$0xff] %v1042
        %1059 = vst [vmem:[#allocation2 + $0x58] sm:$0xff] %v1043
        %1060 = vst [vmem:[#allocation2 + $0x60] sm:$0xff] %v1044
        %1061 = vst [vmem:[#allocation2 + $0x68] sm:$0xff] %v1045
        %1062 = vst [vmem:[#allocation2 + $0x70] sm:$0xff] %v1046
        %1063 = vst [vmem:[#allocation2 + $0x78] sm:$0xff] %v1047
        %p1064 = scmp.eq.s32.totalorder %s23, 2
        // Predicated region
        $region64: #{_lambda_.1} parent=54 // pred_check
          %p1065 = pneg %p1064
        $region65: #{_lambda_.1} parent=54 // pred_check_branch
          %1067 = sbr.rel (%p1065) target = $region67
        $region66: #{_lambda_.1} parent=54 // pred_region
          %v1068 = vld [vmem:[#allocation2] sm:$0xff]
          %v1069 = vld [vmem:[#allocation2 + $0x8] sm:$0xff]
          %v1070 = vld [vmem:[#allocation2 + $0x10] sm:$0xff]
          %v1071 = vld [vmem:[#allocation2 + $0x18] sm:$0xff]
          %v1072 = vld [vmem:[#allocation2 + $0x20] sm:$0xff]
          %v1073 = vld [vmem:[#allocation2 + $0x28] sm:$0xff]
          %v1074 = vld [vmem:[#allocation2 + $0x30] sm:$0xff]
          %v1075 = vld [vmem:[#allocation2 + $0x38] sm:$0xff]
          %v1076 = vld [vmem:[#allocation2 + $0x40] sm:$0xff]
          %v1077 = vld [vmem:[#allocation2 + $0x48] sm:$0xff]
          %v1078 = vld [vmem:[#allocation2 + $0x50] sm:$0xff]
          %v1079 = vld [vmem:[#allocation2 + $0x58] sm:$0xff]
          %v1080 = vld [vmem:[#allocation2 + $0x60] sm:$0xff]
          %v1081 = vld [vmem:[#allocation2 + $0x68] sm:$0xff]
          %v1082 = vld [vmem:[#allocation2 + $0x70] sm:$0xff]
          %v1083 = vld [vmem:[#allocation2 + $0x78] sm:$0xff]
          %v1084 = vld [vmem:[%s354] sm:$0x3]
          %v1086 = vlaneseq
          %v1087 = vshrl.u32 %v1086, 7
          %v1088 = vsub.s32 0, %v1087
          %v1089 = vrot.slane %v1084, %v1088
          %v1090 = vlaneseq
          %v1091 = vshrl.u32 %v1090, 7
          %v1092 = vsub.s32 1, %v1091
          %v1093 = vrot.slane %v1084, %v1092
          %v1096 = vadd.f32 %v1068, %v1089
          %v1097 = vadd.f32 %v1069, %v1093
          %v1098 = vadd.f32 %v1070, %v1089
          %v1099 = vadd.f32 %v1071, %v1093
          %v1100 = vadd.f32 %v1072, %v1089
          %v1101 = vadd.f32 %v1073, %v1093
          %v1102 = vadd.f32 %v1074, %v1089
          %v1103 = vadd.f32 %v1075, %v1093
          %v1104 = vadd.f32 %v1076, %v1089
          %v1105 = vadd.f32 %v1077, %v1093
          %v1106 = vadd.f32 %v1078, %v1089
          %v1107 = vadd.f32 %v1079, %v1093
          %v1108 = vadd.f32 %v1080, %v1089
          %v1109 = vadd.f32 %v1081, %v1093
          %v1110 = vadd.f32 %v1082, %v1089
          %v1111 = vadd.f32 %v1083, %v1093
          %v1112 = vmul.f32 %v1096, 1.702
          %v1113 = vmul.f32 %v1097, 1.702
          %v1114 = vmul.f32 %v1098, 1.702
          %v1115 = vmul.f32 %v1099, 1.702
          %v1116 = vmul.f32 %v1100, 1.702
          %v1117 = vmul.f32 %v1101, 1.702
          %v1118 = vmul.f32 %v1102, 1.702
          %v1119 = vmul.f32 %v1103, 1.702
          %v1120 = vmul.f32 %v1104, 1.702
          %v1121 = vmul.f32 %v1105, 1.702
          %v1122 = vmul.f32 %v1106, 1.702
          %v1123 = vmul.f32 %v1107, 1.702
          %v1124 = vmul.f32 %v1108, 1.702
          %v1125 = vmul.f32 %v1109, 1.702
          %v1126 = vmul.f32 %v1110, 1.702
          %v1127 = vmul.f32 %v1111, 1.702
          %v1128 = vxor.u32 %v1112, 2147483648
          %v1129 = vxor.u32 %v1113, 2147483648
          %v1130 = vxor.u32 %v1114, 2147483648
          %v1131 = vxor.u32 %v1115, 2147483648
          %v1132 = vxor.u32 %v1116, 2147483648
          %v1133 = vxor.u32 %v1117, 2147483648
          %v1134 = vxor.u32 %v1118, 2147483648
          %v1135 = vxor.u32 %v1119, 2147483648
          %v1136 = vxor.u32 %v1120, 2147483648
          %v1137 = vxor.u32 %v1121, 2147483648
          %v1138 = vxor.u32 %v1122, 2147483648
          %v1139 = vxor.u32 %v1123, 2147483648
          %v1140 = vxor.u32 %v1124, 2147483648
          %v1141 = vxor.u32 %v1125, 2147483648
          %v1142 = vxor.u32 %v1126, 2147483648
          %v1143 = vxor.u32 %v1127, 2147483648
          %v1144 = vmul.f32 %v1128, 1.442695
          %v1145 = vpow.pop %v1144
          %v1146 = vmul.f32 %v1129, 1.442695
          %v1147 = vpow.pop %v1146
          %v1148 = vmul.f32 %v1130, 1.442695
          %v1149 = vpow.pop %v1148
          %v1150 = vmul.f32 %v1131, 1.442695
          %v1151 = vpow.pop %v1150
          %v1152 = vmul.f32 %v1132, 1.442695
          %v1153 = vpow.pop %v1152
          %v1154 = vmul.f32 %v1133, 1.442695
          %v1155 = vpow.pop %v1154
          %v1156 = vmul.f32 %v1134, 1.442695
          %v1157 = vpow.pop %v1156
          %v1158 = vmul.f32 %v1135, 1.442695
          %v1159 = vpow.pop %v1158
          %v1160 = vmul.f32 %v1136, 1.442695
          %v1161 = vpow.pop %v1160
          %v1162 = vmul.f32 %v1137, 1.442695
          %v1163 = vpow.pop %v1162
          %v1164 = vmul.f32 %v1138, 1.442695
          %v1165 = vpow.pop %v1164
          %v1166 = vmul.f32 %v1139, 1.442695
          %v1167 = vpow.pop %v1166
          %v1168 = vmul.f32 %v1140, 1.442695
          %v1169 = vpow.pop %v1168
          %v1170 = vmul.f32 %v1141, 1.442695
          %v1171 = vpow.pop %v1170
          %v1172 = vmul.f32 %v1142, 1.442695
          %v1173 = vpow.pop %v1172
          %v1174 = vmul.f32 %v1143, 1.442695
          %v1175 = vpow.pop %v1174
          %v1176 = vadd.f32 %v1145, 1.0
          %v1177 = vadd.f32 %v1147, 1.0
          %v1178 = vadd.f32 %v1149, 1.0
          %v1179 = vadd.f32 %v1151, 1.0
          %v1180 = vadd.f32 %v1153, 1.0
          %v1181 = vadd.f32 %v1155, 1.0
          %v1182 = vadd.f32 %v1157, 1.0
          %v1183 = vadd.f32 %v1159, 1.0
          %v1184 = vadd.f32 %v1161, 1.0
          %v1185 = vadd.f32 %v1163, 1.0
          %v1186 = vadd.f32 %v1165, 1.0
          %v1187 = vadd.f32 %v1167, 1.0
          %v1188 = vadd.f32 %v1169, 1.0
          %v1189 = vadd.f32 %v1171, 1.0
          %v1190 = vadd.f32 %v1173, 1.0
          %v1191 = vadd.f32 %v1175, 1.0
          %v1192 = vrcp.pop %v1176
          %v1193 = vmul.f32 1.0, %v1192
          %v1194 = vrcp.pop %v1177
          %v1195 = vmul.f32 1.0, %v1194
          %v1196 = vrcp.pop %v1178
          %v1197 = vmul.f32 1.0, %v1196
          %v1198 = vrcp.pop %v1179
          %v1199 = vmul.f32 1.0, %v1198
          %v1200 = vrcp.pop %v1180
          %v1201 = vmul.f32 1.0, %v1200
          %v1202 = vrcp.pop %v1181
          %v1203 = vmul.f32 1.0, %v1202
          %v1204 = vrcp.pop %v1182
          %v1205 = vmul.f32 1.0, %v1204
          %v1206 = vrcp.pop %v1183
          %v1207 = vmul.f32 1.0, %v1206
          %v1208 = vrcp.pop %v1184
          %v1209 = vmul.f32 1.0, %v1208
          %v1210 = vrcp.pop %v1185
          %v1211 = vmul.f32 1.0, %v1210
          %v1212 = vrcp.pop %v1186
          %v1213 = vmul.f32 1.0, %v1212
          %v1214 = vrcp.pop %v1187
          %v1215 = vmul.f32 1.0, %v1214
          %v1216 = vrcp.pop %v1188
          %v1217 = vmul.f32 1.0, %v1216
          %v1218 = vrcp.pop %v1189
          %v1219 = vmul.f32 1.0, %v1218
          %v1220 = vrcp.pop %v1190
          %v1221 = vmul.f32 1.0, %v1220
          %v1222 = vrcp.pop %v1191
          %v1223 = vmul.f32 1.0, %v1222
          %v1224 = vmul.f32 %v1096, %v1193
          %v1225 = vmul.f32 %v1097, %v1195
          %v1226 = vmul.f32 %v1098, %v1197
          %v1227 = vmul.f32 %v1099, %v1199
          %v1228 = vmul.f32 %v1100, %v1201
          %v1229 = vmul.f32 %v1101, %v1203
          %v1230 = vmul.f32 %v1102, %v1205
          %v1231 = vmul.f32 %v1103, %v1207
          %v1232 = vmul.f32 %v1104, %v1209
          %v1233 = vmul.f32 %v1105, %v1211
          %v1234 = vmul.f32 %v1106, %v1213
          %v1235 = vmul.f32 %v1107, %v1215
          %v1236 = vmul.f32 %v1108, %v1217
          %v1237 = vmul.f32 %v1109, %v1219
          %v1238 = vmul.f32 %v1110, %v1221
          %v1239 = vmul.f32 %v1111, %v1223
          %v1240 = vld [vmem:[%s365] sm:$0xff]
          %v1241 = vld [vmem:[%s365 + $0x8] sm:$0xff]
          %v1242 = vld [vmem:[%s365 + $0x10] sm:$0xff]
          %v1243 = vld [vmem:[%s365 + $0x18] sm:$0xff]
          %v1244 = vld [vmem:[%s365 + $0x20] sm:$0xff]
          %v1245 = vld [vmem:[%s365 + $0x28] sm:$0xff]
          %v1246 = vld [vmem:[%s365 + $0x30] sm:$0xff]
          %v1247 = vld [vmem:[%s365 + $0x38] sm:$0xff]
          %v1248 = vunpack.c.l.bf16 %v1240
          %v1249 = vunpack.c.h.bf16 %v1240
          %v1250 = vunpack.c.l.bf16 %v1241
          %v1251 = vunpack.c.h.bf16 %v1241
          %v1252 = vunpack.c.l.bf16 %v1242
          %v1253 = vunpack.c.h.bf16 %v1242
          %v1254 = vunpack.c.l.bf16 %v1243
          %v1255 = vunpack.c.h.bf16 %v1243
          %v1256 = vunpack.c.l.bf16 %v1244
          %v1257 = vunpack.c.h.bf16 %v1244
          %v1258 = vunpack.c.l.bf16 %v1245
          %v1259 = vunpack.c.h.bf16 %v1245
          %v1260 = vunpack.c.l.bf16 %v1246
          %v1261 = vunpack.c.h.bf16 %v1246
          %v1262 = vunpack.c.l.bf16 %v1247
          %v1263 = vunpack.c.h.bf16 %v1247
          %v1264 = vadd.f32 %v1224, %v1248
          %v1265 = vadd.f32 %v1225, %v1249
          %v1266 = vadd.f32 %v1226, %v1250
          %v1267 = vadd.f32 %v1227, %v1251
          %v1268 = vadd.f32 %v1228, %v1252
          %v1269 = vadd.f32 %v1229, %v1253
          %v1270 = vadd.f32 %v1230, %v1254
          %v1271 = vadd.f32 %v1231, %v1255
          %v1272 = vadd.f32 %v1232, %v1256
          %v1273 = vadd.f32 %v1233, %v1257
          %v1274 = vadd.f32 %v1234, %v1258
          %v1275 = vadd.f32 %v1235, %v1259
          %v1276 = vadd.f32 %v1236, %v1260
          %v1277 = vadd.f32 %v1237, %v1261
          %v1278 = vadd.f32 %v1238, %v1262
          %v1279 = vadd.f32 %v1239, %v1263
          %v1280 = vpack.c.bf16 %v1266, %v1264
          %v1281 = vpack.c.bf16 %v1267, %v1265
          %v1282 = vpack.c.bf16 %v1270, %v1268
          %v1283 = vpack.c.bf16 %v1271, %v1269
          %v1284 = vpack.c.bf16 %v1274, %v1272
          %v1285 = vpack.c.bf16 %v1275, %v1273
          %v1286 = vpack.c.bf16 %v1278, %v1276
          %v1287 = vpack.c.bf16 %v1279, %v1277
          %v1296 = vunpack.c.l.b16 %v1280
          %v1297 = vunpack.c.l.b16 %v1281
          %v1298 = vunpack.c.h.b16 %v1280
          %v1299 = vunpack.c.h.b16 %v1281
          %v1300 = vunpack.c.l.b16 %v1282
          %v1301 = vunpack.c.l.b16 %v1283
          %v1302 = vunpack.c.h.b16 %v1282
          %v1303 = vunpack.c.h.b16 %v1283
          %v1304 = vunpack.c.l.b16 %v1284
          %v1305 = vunpack.c.l.b16 %v1285
          %v1306 = vunpack.c.h.b16 %v1284
          %v1307 = vunpack.c.h.b16 %v1285
          %v1308 = vunpack.c.l.b16 %v1286
          %v1309 = vunpack.c.l.b16 %v1287
          %v1310 = vunpack.c.h.b16 %v1286
          %v1311 = vunpack.c.h.b16 %v1287
          %v1312 = vpack.c.b16 %v1297, %v1296
          %v1313 = vpack.c.b16 %v1299, %v1298
          %v1314 = vpack.c.b16 %v1301, %v1300
          %v1315 = vpack.c.b16 %v1303, %v1302
          %v1316 = vpack.c.b16 %v1305, %v1304
          %v1317 = vpack.c.b16 %v1307, %v1306
          %v1318 = vpack.c.b16 %v1309, %v1308
          %v1319 = vpack.c.b16 %v1311, %v1310
          %1328 = vst [vmem:[#allocation4] sm:$0xff] %v1312
          %1329 = vst [vmem:[#allocation4 + $0x8] sm:$0xff] %v1313
          %1330 = vst [vmem:[#allocation4 + $0x10] sm:$0xff] %v1314
          %1331 = vst [vmem:[#allocation4 + $0x18] sm:$0xff] %v1315
          %1332 = vst [vmem:[#allocation4 + $0x20] sm:$0xff] %v1316
          %1333 = vst [vmem:[#allocation4 + $0x28] sm:$0xff] %v1317
          %1334 = vst [vmem:[#allocation4 + $0x30] sm:$0xff] %v1318
          %1335 = vst [vmem:[#allocation4 + $0x38] sm:$0xff] %v1319
        $region67: #{_lambda_.1} parent=54 // pred_fallthru
          _
        // Predicated region
        $region68: #{_lambda_.1} parent=54 // pred_check
          %p1336 = pneg %p165
        $region69: #{_lambda_.1} parent=54 // pred_check_branch
          %1338 = sbr.rel (%p1336) target = $region71
        $region70: #{_lambda_.1} parent=54 // pred_region
          %s1339 = smul.u32 8, %s21
          %s1340 = smul.u32 2, %s22
          %s1342 = ssub.s32 1024, 1024
          %1343 = vsyncadd [#allocation5], %s1342
          %s1344 = smul.addr %s1339, 2
          %s1345 = sadd.s32 %s1340, %s1344
          %s1346 = smul.addr %s1345, 64
          %s1347 = scalar_lea.hbm %s4, %s1346
          %s1348 = sshll.u32 [#allocation4], 4
          %s1349 = int_to_ptr.vmem [resolvable:$true] %s1348
          %1354 = dma.vmem_to_hbm [thread:$0]  %s1349, 1024, %s1347, [#allocation5], 128, 128, 8
        $region71: #{_lambda_.1} parent=54 // pred_fallthru
          _
        // Predicated region
        $region72: #{_lambda_.1} parent=54 // pred_check
          %p1355 = pneg %p165
        $region73: #{_lambda_.1} parent=54 // pred_check_branch
          %1357 = sbr.rel (%p1355) target = $region75
        $region74: #{_lambda_.1} parent=54 // pred_region
          %1358 = dma.done [#allocation5], 1024
        $region75: #{_lambda_.1} parent=54 // pred_fallthru
          _
      $region55: #{_lambda_.1} parent=5 // pred_fallthru
        _
      %p1359 = scmp.le.s32.totalorder 2, %s11
      // Predicated region
      $region76: #{_lambda_.1} parent=5 // pred_check
        %p1360 = pneg %p1359
      $region77: #{_lambda_.1} parent=5 // pred_check_branch
        %1362 = sbr.rel (%p1360) target = $region79
      $region78: #{_lambda_.1} parent=5 // pred_region
        %s1363 = ssub.s32 %s11, 2
      $region79: #{_lambda_.1} parent=5 // pred_fallthru
        _
    $region6: #{_lambda_.1} parent=1 // loop_footer
      %s15 = sadd.s32 1, %s11
    $region7: #{_lambda_.1} parent=1 // loop_footer_branch
      %10 = sbr.rel target = $region3
    $region8: #{_lambda_.1} parent=1 // loop_exit
      _
    %1364 = vsyncpa [#allocation5], 1
    %s1365 = scalar_lea.sflag [#allocation5], 1
    %1366 = vsyncpa %s1365, 1

</llo_original>
